<compile_context>
chip_gen: v7x
topology: tpu7x:2x2x1
jax: 0.10.0
libtpu: 0.0.40
codegen_flags: <defaults>
</compile_context>

<pallas_src>
import numpy as np
import jax
import jax.numpy as jnp
from jax import lax
from jax.experimental import pallas as pl
from jax.experimental.pallas import tpu as pltpu

# ---- hyper-parameters (the module-level globals of the PyTorch file) ----
I_CHANNEL = 4          # i_channel
O_CHANNEL = 8          # o_channel
C_NUM = 2              # c_num  (convs per us block)
S_NUM = 2              # s_num  (number of us / up-sampling blocks)
HEIGHT = 16            # height
WIDTH = 16             # width
FC1_NODES = 32         # fc1_nodes
DIM_LATENT = 8         # dim_latent
BATCH = 2
BN_EPS = 1e-5

H0 = HEIGHT // (2 ** S_NUM)    # 4   (feature-map height after fc view)
W0 = WIDTH // (2 ** S_NUM)     # 4


# ---------------------- host-side slab / weight packing ----------------------
def _round8(n):
    return -(-n // 8) * 8


class _Slab:
    """Packs many small f32 matrices into one (8 x width)-aligned slab (one DMA)."""

    def __init__(self, width):
        self.width = width
        self._bands = []
        self.offsets = {}
        self._n = 0

    def add(self, name, arr):
        arr = np.asarray(arr, np.float32)
        if arr.ndim == 1:
            arr = arr.reshape(1, -1)
        r, c = arr.shape
        assert c <= self.width, (name, arr.shape, self.width)
        band = np.zeros((_round8(r), self.width), np.float32)
        band[:r, :c] = arr
        self.offsets[name] = (self._n, r, c)
        self._bands.append(band)
        self._n += band.shape[0]

    def build(self):
        return jnp.asarray(np.concatenate(self._bands, axis=0)), dict(self.offsets)


def _pack_conv3x3(w, b, w_dim):
    """Conv2d(k=3, pad=1) as ONE K-stacked banded matrix.

    w: (Cout, Cin, 3, 3) PyTorch layout; b: (Cout,).
    Returns M of shape (3*w_dim*Cin, w_dim*Cout) whose row blocks correspond to
    vertical taps dy = -1, 0, +1, and a bias row (1, w_dim*Cout).
    """
    cout, cin = w.shape[0], w.shape[1]
    m = np.zeros((3, w_dim * cin, w_dim * cout), np.float32)
    for ky in range(3):
        for kx in range(3):
            dx = kx - 1
            for wo in range(w_dim):
                wi = wo + dx
                if 0 <= wi < w_dim:
                    m[ky, wi * cin:(wi + 1) * cin, wo * cout:(wo + 1) * cout] = w[:, :, ky, kx].T
    m = m.reshape(3 * w_dim * cin, w_dim * cout)
    bias = np.tile(np.asarray(b, np.float32).reshape(1, cout), (1, w_dim))
    return m, bias


def _pack_upconv2x2(w, b, w_dim):
    """ConvTranspose2d(k=2, s=2).  w: (Cin, Cout, 2, 2); b: (Cout,).

    Returns U0, U1 of shape (w_dim*Cin, 2*w_dim*Cout) producing the even / odd
    output rows, and a bias row (1, 2*w_dim*Cout).
    """
    cin, cout = w.shape[0], w.shape[1]
    u = np.zeros((2, w_dim * cin, 2 * w_dim * cout), np.float32)
    for ky in range(2):
        for kx in range(2):
            for wi in range(w_dim):
                wo = 2 * wi + kx
                u[ky, wi * cin:(wi + 1) * cin, wo * cout:(wo + 1) * cout] = w[:, :, ky, kx]
    bias = np.tile(np.asarray(b, np.float32).reshape(1, cout), (1, 2 * w_dim))
    return u[0], u[1], bias


def _interleave_perm(batch, h_dim):
    """P (2R, 2R), R=batch*h_dim, s.t. out = P @ [even_rows ; odd_rows]."""
    r = batch * h_dim
    p = np.zeros((2 * r, 2 * r), np.float32)
    for i in range(2 * r):
        b, h2 = i // (2 * h_dim), i % (2 * h_dim)
        p[i, (h2 % 2) * r + b * h_dim + h2 // 2] = 1.0
    return p


def _stack_identity(w_dim, c):
    """(w_dim*c, c): collapses per-w lane groups into per-channel stats."""
    s = np.zeros((w_dim * c, c), np.float32)
    s[np.arange(w_dim * c), np.arange(w_dim * c) % c] = 1.0
    return s


def _shift_mask(batch, h_dim, lanes):
    """(R, 3*lanes) validity mask for the [shift(-1)|shift(0)|shift(+1)] lanes."""
    r = batch * h_dim
    m = np.ones((r, 3 * lanes), np.float32)
    h = np.arange(r) % h_dim
    m[h == 0, 0:lanes] = 0.0                   # no row above at image top
    m[h == h_dim - 1, 2 * lanes:3 * lanes] = 0.0   # no row below at image bottom
    return m


def pack_params(p, batch):
    """PyTorch-layout params -> two kernel-ready slabs + static offset tables."""
    c = O_CHANNEL
    wsl = _Slab(128)                 # all matmul matrices (128 lanes each)
    csl = _Slab(3 * WIDTH * c)       # bias / gamma / beta rows + boundary masks (384 lanes)

    # ---- fc head ----
    wsl.add('W0', p['input_fc_w'].T)                                       # (8, 32)
    csl.add('B0', p['input_fc_b'].reshape(1, -1))
    # fc1 columns re-ordered from NCHW-view order (c,h,w) to (h,w,c) so the
    # kernel emits the feature map directly in (B*H0, W0*C) layout.
    w1 = p['fc1_w'].T.reshape(FC1_NODES, c, H0, W0).transpose(0, 2, 3, 1)
    wsl.add('W1', w1.reshape(FC1_NODES, H0 * W0 * c))                      # (32, 128)
    csl.add('B1', p['fc1_b'].reshape(c, H0, W0).transpose(1, 2, 0).reshape(1, H0 * W0 * c))
    q = np.zeros((batch * H0, batch), np.float32)                          # row-replicate hidden
    q[np.arange(batch * H0), np.arange(batch * H0) // H0] = 1.0
    wsl.add('Q', q)
    mfc = np.zeros((batch * H0, H0 * W0 * c), np.float32)                  # keep own h-block
    for r in range(batch * H0):
        h = r % H0
        mfc[r, h * W0 * c:(h + 1) * W0 * c] = 1.0
    csl.add('MFC', mfc)
    ffold = np.zeros((H0 * W0 * c, W0 * c), np.float32)                    # fold 128 -> 32 lanes
    ffold[np.arange(H0 * W0 * c), np.arange(H0 * W0 * c) % (W0 * c)] = 1.0
    wsl.add('FFOLD', ffold)

    # ---- us blocks ----
    w_dim, h_dim = W0, H0
    for si, blk in enumerate(p['us'], start=1):
        for ci, cv in enumerate(blk['convs'], start=1):
            m, _ = _pack_conv3x3(cv['w'], cv['b'], w_dim)
            # conv bias dropped: training-mode (batch-stat) BatchNorm makes it a no-op.
            wsl.add(f'C{si}{ci}', m)
            csl.add(f'GB{si}{ci}', np.stack([cv['gamma'], cv['beta']], axis=0))
        s = _stack_identity(w_dim, c)
        wsl.add(f'S{si}', s)                 # (W*C, C): stat collapse
        wsl.add(f'T{si}', s.T)               # (C, W*C): lane tiling of scale/shift
        csl.add(f'MASK{si}', _shift_mask(batch, h_dim, w_dim * c))
        u0, u1, ub = _pack_upconv2x2(blk['us_w'], blk['us_b'], w_dim)
        wsl.add(f'U{si}0', u0)
        wsl.add(f'U{si}1', u1)
        csl.add(f'UB{si}', ub)
        wsl.add(f'P{si}', _interleave_perm(batch, h_dim))
        w_dim *= 2
        h_dim *= 2

    # ---- output conv: zero-pad Cout 4 -> 8 for a lane-dense 128-wide output ----
    wo = np.zeros((c, c, 3, 3), np.float32)
    wo[:I_CHANNEL] = p['out_w']
    bo = np.zeros((c,), np.float32)
    bo[:I_CHANNEL] = p['out_b']
    mo, bro = _pack_conv3x3(wo, bo, WIDTH)
    wsl.add('COUT', mo)                                                    # (384, 128)
    csl.add('BOUT', bro)
    csl.add('MASKO', _shift_mask(batch, HEIGHT, WIDTH * c))

    wslab, woff = wsl.build()
    cslab, coff = csl.build()
    return wslab, cslab, woff, coff


# ------------------------------ fused kernel ------------------------------
def _make_kernel(woff, coff):
    def kernel(z_ref, w_ref, c_ref, o_ref):
        f32 = jnp.float32

        def wm(name):
            off, r, cc = woff[name]
            return w_ref[off:off + r, :cc]

        def cm(name):
            off, r, cc = coff[name]
            return c_ref[off:off + r, :cc]

        def roll_rows(x, shift):
            # positive-normalized shift; invalid wrapped rows are zeroed by the mask
            return pltpu.roll(x, shift=shift % x.shape[0], axis=0)

        def conv3x3(x, mat, mask, bias=None):
            # one K-stacked MXU matmul over lanes = [shift(-1) | shift(0) | shift(+1)]
            xm = roll_rows(x, 1)     # row r <- x[r-1]   (vertical tap dy = -1)
            xp = roll_rows(x, -1)    # row r <- x[r+1]   (vertical tap dy = +1)
            xcat = jnp.concatenate([xm, x, xp], axis=1) * mask
            y = jnp.dot(xcat, mat, preferred_element_type=f32)
            return y if bias is None else y + bias

        def bn_relu(y, gb, smat, tmat, inv_n):
            # training-mode BatchNorm2d (batch stats, biased variance) + ReLU
            col = jnp.concatenate([jnp.sum(y, axis=0, keepdims=True),
                                   jnp.sum(y * y, axis=0, keepdims=True)], axis=0)
            st = jnp.dot(col, smat, preferred_element_type=f32) * inv_n    # (2, C)
            mean = st[0:1, :]
            # TODO(synk): E[x^2]-mean^2 can cancel for large activations; fine at this scale.
            var = st[1:2, :] - mean * mean
            scale = gb[0:1, :] * lax.rsqrt(var + BN_EPS)
            shift = gb[1:2, :] - mean * scale
            sst = jnp.dot(jnp.concatenate([scale, shift], axis=0), tmat,
                          preferred_element_type=f32)                      # tile to (2, W*C) on MXU
            return jnp.maximum(y * sst[0:1, :] + sst[1:2, :], 0.0)

        def upconv_relu(x, u0, u1, bias, pmat):
            # ConvTranspose2d(k=2, s=2) + ReLU: (B*H, W*C) -> (B*2H, 2W*C)
            y0 = jnp.dot(x, u0, preferred_element_type=f32)                # even output rows
            y1 = jnp.dot(x, u1, preferred_element_type=f32)                # odd output rows
            ys = jnp.concatenate([y0, y1], axis=0)
            out = jnp.dot(pmat, ys, preferred_element_type=f32) + bias     # row interleave on MXU
            return jnp.maximum(out, 0.0)

        batch = z_ref.shape[0]

        # ---- fc head: relu(input_fc) -> relu(fc1), emitted in (B*H0, W0*C) layout ----
        hid = jnp.maximum(
            jnp.dot(z_ref[...], wm('W0'), preferred_element_type=f32) + cm('B0'), 0.0)
        zr = jnp.dot(wm('Q'), hid, preferred_element_type=f32)             # replicate per image row
        zp = jnp.dot(zr, wm('W1'), preferred_element_type=f32) + cm('B1')
        x = jnp.maximum(
            jnp.dot(zp * cm('MFC'), wm('FFOLD'), preferred_element_type=f32), 0.0)  # (B*4, 32)

        # ---- us block 1: 4x4 -> 8x8 ----
        inv_n = 1.0 / (batch * H0 * W0)
        m1, s1, t1 = cm('MASK1'), wm('S1'), wm('T1')
        x_in = x
        x = bn_relu(conv3x3(x, wm('C11'), m1), cm('GB11'), s1, t1, inv_n)
        x = bn_relu(conv3x3(x, wm('C12'), m1), cm('GB12'), s1, t1, inv_n)
        x = x + x_in
        x = upconv_relu(x, wm('U10'), wm('U11'), cm('UB1'), wm('P1'))      # (B*8, 64)

        # ---- us block 2: 8x8 -> 16x16 ----
        inv_n = 1.0 / (batch * (2 * H0) * (2 * W0))
        m2, s2, t2 = cm('MASK2'), wm('S2'), wm('T2')
        x_in = x
        x = bn_relu(conv3x3(x, wm('C21'), m2), cm('GB21'), s2, t2, inv_n)
        x = bn_relu(conv3x3(x, wm('C22'), m2), cm('GB22'), s2, t2, inv_n)
        x = x + x_in
        x = upconv_relu(x, wm('U20'), wm('U21'), cm('UB2'), wm('P2'))      # (B*16, 128)

        # ---- output conv (lane-dense, Cout padded 4->8) + sigmoid on the EUP ----
        y = conv3x3(x, wm('COUT'), cm('MASKO'), bias=cm('BOUT'))
        sig = pl.reciprocal(1.0 + jnp.exp(-y), approx=True)
        o_ref[...] = jnp.clip(sig, 0.0, 1.0)                               # guard approx overshoot

    return kernel


# ------------------------- pallas_call wrapper -------------------------
def make_decoder(woff, coff):
    kernel = _make_kernel(woff, coff)

    @jax.jit
    def forward(z, wslab, cslab):
        batch = z.shape[0]
        out_rows = batch * HEIGHT
        out_cols = WIDTH * O_CHANNEL            # 128: full lane-dense (padded) output tile
        out2d = pl.pallas_call(
            kernel,
            grid=(1,),
            in_specs=[pl.BlockSpec(z.shape, lambda i: (0, 0)),
                      pl.BlockSpec(wslab.shape, lambda i: (0, 0)),
                      pl.BlockSpec(cslab.shape, lambda i: (0, 0))],
            out_specs=pl.BlockSpec((out_rows, out_cols), lambda i: (0, 0)),
            out_shape=jax.ShapeDtypeStruct((out_rows, out_cols), jnp.float32),
            compiler_params=pltpu.CompilerParams(dimension_semantics=("arbitrary",)),
            cost_estimate=pl.CostEstimate(flops=5_000_000, transcendentals=8192,
                                          bytes_accessed=1_600_000),
        )(z, wslab, cslab)
        # lane-dense (B*H, W*Cpad) slab -> NCHW, dropping the padded channels.
        out = out2d.reshape(batch, HEIGHT, WIDTH, O_CHANNEL)[..., :I_CHANNEL]
        return out.transpose(0, 3, 1, 2)

    return forward


# ------------------------ deterministic params ------------------------
def init_params(key):
    keys = iter(jax.random.split(key, 64))

    def nrm(shape, scale=0.1):
        return np.asarray(scale * jax.random.normal(next(keys), shape, dtype=jnp.float32))

    p = {}
    p['input_fc_w'] = nrm((FC1_NODES, DIM_LATENT))             # nn.Linear (out, in)
    p['input_fc_b'] = nrm((FC1_NODES,))
    fc_out = O_CHANNEL * H0 * W0
    p['fc1_w'] = nrm((fc_out, FC1_NODES))
    p['fc1_b'] = nrm((fc_out,))
    p['us'] = []
    for _ in range(S_NUM):
        blk = {'convs': []}
        for _ in range(C_NUM):
            blk['convs'].append({
                'w': nrm((O_CHANNEL, O_CHANNEL, 3, 3)),        # Conv2d (Cout, Cin, kh, kw)
                'b': nrm((O_CHANNEL,)),
                'gamma': (1.0 + nrm((O_CHANNEL,))).astype(np.float32),
                'beta': nrm((O_CHANNEL,)),
            })
        blk['us_w'] = nrm((O_CHANNEL, O_CHANNEL, 2, 2))        # ConvTranspose2d (Cin, Cout, kh, kw)
        blk['us_b'] = nrm((O_CHANNEL,))
        p['us'].append(blk)
    p['out_w'] = nrm((I_CHANNEL, O_CHANNEL, 3, 3))
    p['out_b'] = nrm((I_CHANNEL,))
    return p


if __name__ == "__main__":
    key = jax.random.PRNGKey(0)
    pkey, zkey = jax.random.split(key)
    params = init_params(pkey)
    wslab, cslab, woff, coff = pack_params(params, BATCH)
    forward = make_decoder(woff, coff)

    z = jax.random.normal(zkey, (BATCH, DIM_LATENT), dtype=jnp.float32)
    out = jax.block_until_ready(forward(z, wslab, cslab))

    assert out.shape == (BATCH, I_CHANNEL, HEIGHT, WIDTH), out.shape
    assert bool(jnp.all(jnp.isfinite(out)))
    assert bool(jnp.all((out >= 0.0) & (out <= 1.0)))          # sigmoid output range
    print("KERNEL_OK")
</pallas_src>

<mosaic_0001>
module attributes {stable_mosaic.version = 11 : i64} {
  func.func @kernel(%arg0: i32, %arg1: memref<2x8xf32, #tpu.memory_space<vmem>>, %arg2: memref<1488x128xf32, #tpu.memory_space<vmem>>, %arg3: memref<136x384xf32, #tpu.memory_space<vmem>>, %arg4: memref<32x128xf32, #tpu.memory_space<vmem>>) attributes {dimension_semantics = [#tpu.dimension_semantics<arbitrary>], iteration_bounds = array<i64: 1>, scalar_prefetch = 0 : i64, scratch_operands = 0 : i64, tpu.core_type = #tpu.core_type<tc>, window_params = [{pipeline_mode = #tpu.pipeline_mode<synchronous>, transform_indices = @transform_0, window_bounds = array<i64: 2, 8>}, {pipeline_mode = #tpu.pipeline_mode<synchronous>, transform_indices = @transform_1, window_bounds = array<i64: 1488, 128>}, {pipeline_mode = #tpu.pipeline_mode<synchronous>, transform_indices = @transform_2, window_bounds = array<i64: 136, 384>}, {pipeline_mode = #tpu.pipeline_mode<synchronous>, transform_indices = @transform_3, window_bounds = array<i64: 32, 128>}]} {
    %c0 = arith.constant 0 : index
    %c0_0 = arith.constant 0 : index
    %0 = vector.load %arg1[%c0, %c0_0] : memref<2x8xf32, #tpu.memory_space<vmem>>, vector<2x8xf32>
    %c0_1 = arith.constant 0 : index
    %c0_2 = arith.constant 0 : index
    %1 = vector.load %arg2[%c0_1, %c0_2] : memref<1488x128xf32, #tpu.memory_space<vmem>>, vector<8x32xf32>
    %cst = arith.constant dense<0.000000e+00> : vector<2x32xf32>
    %2 = tpu.matmul %0, %1, %cst {dimension_numbers = #tpu.dot_dimension_numbers<[1], [0], [0], [1], [0, 0, 1, 1], [], []>} : vector<2x8xf32>, vector<8x32xf32>, vector<2x32xf32> -> vector<2x32xf32>
    %c0_3 = arith.constant 0 : index
    %c0_4 = arith.constant 0 : index
    %3 = vector.load %arg3[%c0_3, %c0_4] : memref<136x384xf32, #tpu.memory_space<vmem>>, vector<1x32xf32>
    %4 = vector.broadcast %3 : vector<1x32xf32> to vector<2x32xf32>
    %5 = arith.addf %2, %4 : vector<2x32xf32>
    %cst_5 = arith.constant 0.000000e+00 : f32
    %6 = vector.broadcast %cst_5 : f32 to vector<2x32xf32>
    %7 = arith.maximumf %5, %6 : vector<2x32xf32>
    %c40 = arith.constant 40 : index
    %c0_6 = arith.constant 0 : index
    %8 = vector.load %arg2[%c40, %c0_6] : memref<1488x128xf32, #tpu.memory_space<vmem>>, vector<8x2xf32>
    %cst_7 = arith.constant dense<0.000000e+00> : vector<8x32xf32>
    %9 = tpu.matmul %8, %7, %cst_7 {dimension_numbers = #tpu.dot_dimension_numbers<[1], [0], [0], [1], [0, 0, 1, 1], [], []>} : vector<8x2xf32>, vector<2x32xf32>, vector<8x32xf32> -> vector<8x32xf32>
    %c8 = arith.constant 8 : index
    %c0_8 = arith.constant 0 : index
    %10 = vector.load %arg2[%c8, %c0_8] : memref<1488x128xf32, #tpu.memory_space<vmem>>, vector<32x128xf32>
    %cst_9 = arith.constant dense<0.000000e+00> : vector<8x128xf32>
    %11 = tpu.matmul %9, %10, %cst_9 {dimension_numbers = #tpu.dot_dimension_numbers<[1], [0], [0], [1], [0, 0, 1, 1], [], []>} : vector<8x32xf32>, vector<32x128xf32>, vector<8x128xf32> -> vector<8x128xf32>
    %c8_10 = arith.constant 8 : index
    %c0_11 = arith.constant 0 : index
    %12 = vector.load %arg3[%c8_10, %c0_11] : memref<136x384xf32, #tpu.memory_space<vmem>>, vector<1x128xf32>
    %13 = vector.broadcast %12 : vector<1x128xf32> to vector<8x128xf32>
    %14 = arith.addf %11, %13 : vector<8x128xf32>
    %c16 = arith.constant 16 : index
    %c0_12 = arith.constant 0 : index
    %15 = vector.load %arg3[%c16, %c0_12] : memref<136x384xf32, #tpu.memory_space<vmem>>, vector<8x128xf32>
    %16 = arith.mulf %14, %15 : vector<8x128xf32>
    %c48 = arith.constant 48 : index
    %c0_13 = arith.constant 0 : index
    %17 = vector.load %arg2[%c48, %c0_13] : memref<1488x128xf32, #tpu.memory_space<vmem>>, vector<128x32xf32>
    %cst_14 = arith.constant dense<0.000000e+00> : vector<8x32xf32>
    %18 = tpu.matmul %16, %17, %cst_14 {dimension_numbers = #tpu.dot_dimension_numbers<[1], [0], [0], [1], [0, 0, 1, 1], [], []>} : vector<8x128xf32>, vector<128x32xf32>, vector<8x32xf32> -> vector<8x32xf32>
    %cst_15 = arith.constant 0.000000e+00 : f32
    %19 = vector.broadcast %cst_15 : f32 to vector<8x32xf32>
    %20 = arith.maximumf %18, %19 : vector<8x32xf32>
    %c40_16 = arith.constant 40 : index
    %c0_17 = arith.constant 0 : index
    %21 = vector.load %arg3[%c40_16, %c0_17] : memref<136x384xf32, #tpu.memory_space<vmem>>, vector<8x96xf32>
    %c368 = arith.constant 368 : index
    %c0_18 = arith.constant 0 : index
    %22 = vector.load %arg2[%c368, %c0_18] : memref<1488x128xf32, #tpu.memory_space<vmem>>, vector<32x8xf32>
    %c400 = arith.constant 400 : index
    %c0_19 = arith.constant 0 : index
    %23 = vector.load %arg2[%c400, %c0_19] : memref<1488x128xf32, #tpu.memory_space<vmem>>, vector<8x32xf32>
    %c176 = arith.constant 176 : index
    %c0_20 = arith.constant 0 : index
    %24 = vector.load %arg2[%c176, %c0_20] : memref<1488x128xf32, #tpu.memory_space<vmem>>, vector<96x32xf32>
    %c1_i32 = arith.constant 1 : i32
    %25 = tpu.dynamic_rotate %20 by %c1_i32 dim 0 : vector<8x32xf32>, i32 -> vector<8x32xf32>
    %c7_i32 = arith.constant 7 : i32
    %26 = tpu.dynamic_rotate %20 by %c7_i32 dim 0 : vector<8x32xf32>, i32 -> vector<8x32xf32>
    %27 = tpu.concatenate %25, %20, %26 in 1 : vector<8x32xf32>, vector<8x32xf32>, vector<8x32xf32> -> vector<8x96xf32>
    %28 = arith.mulf %27, %21 : vector<8x96xf32>
    %cst_21 = arith.constant dense<0.000000e+00> : vector<8x32xf32>
    %29 = tpu.matmul %28, %24, %cst_21 {dimension_numbers = #tpu.dot_dimension_numbers<[1], [0], [0], [1], [0, 0, 1, 1], [], []>} : vector<8x96xf32>, vector<96x32xf32>, vector<8x32xf32> -> vector<8x32xf32>
    %c24 = arith.constant 24 : index
    %c0_22 = arith.constant 0 : index
    %30 = vector.load %arg3[%c24, %c0_22] : memref<136x384xf32, #tpu.memory_space<vmem>>, vector<2x8xf32>
    %cst_23 = arith.constant dense<0.000000e+00> : vector<32xf32>
    %31 = vector.multi_reduction <add>, %29, %cst_23 [0] : vector<8x32xf32> to vector<32xf32>
    %32 = vector.shape_cast %31 : vector<32xf32> to vector<1x32xf32>
    %33 = arith.mulf %29, %29 : vector<8x32xf32>
    %cst_24 = arith.constant dense<0.000000e+00> : vector<32xf32>
    %34 = vector.multi_reduction <add>, %33, %cst_24 [0] : vector<8x32xf32> to vector<32xf32>
    %35 = vector.shape_cast %34 : vector<32xf32> to vector<1x32xf32>
    %36 = tpu.concatenate %32, %35 in 0 : vector<1x32xf32>, vector<1x32xf32> -> vector<2x32xf32>
    %cst_25 = arith.constant dense<0.000000e+00> : vector<2x8xf32>
    %37 = tpu.matmul %36, %22, %cst_25 {dimension_numbers = #tpu.dot_dimension_numbers<[1], [0], [0], [1], [0, 0, 1, 1], [], []>} : vector<2x32xf32>, vector<32x8xf32>, vector<2x8xf32> -> vector<2x8xf32>
    %cst_26 = arith.constant 3.125000e-02 : f32
    %38 = vector.broadcast %cst_26 : f32 to vector<2x8xf32>
    %39 = arith.mulf %37, %38 : vector<2x8xf32>
    %40 = vector.extract_strided_slice %39 {offsets = [0, 0], sizes = [1, 8], strides = [1, 1]} : vector<2x8xf32> to vector<1x8xf32>
    %41 = vector.extract_strided_slice %39 {offsets = [1, 0], sizes = [1, 8], strides = [1, 1]} : vector<2x8xf32> to vector<1x8xf32>
    %42 = arith.mulf %40, %40 : vector<1x8xf32>
    %43 = arith.subf %41, %42 : vector<1x8xf32>
    %44 = vector.extract_strided_slice %30 {offsets = [0, 0], sizes = [1, 8], strides = [1, 1]} : vector<2x8xf32> to vector<1x8xf32>
    %cst_27 = arith.constant 9.99999974E-6 : f32
    %45 = vector.broadcast %cst_27 : f32 to vector<1x8xf32>
    %46 = arith.addf %43, %45 : vector<1x8xf32>
    %47 = math.rsqrt %46 : vector<1x8xf32>
    %48 = arith.mulf %44, %47 : vector<1x8xf32>
    %49 = vector.extract_strided_slice %30 {offsets = [1, 0], sizes = [1, 8], strides = [1, 1]} : vector<2x8xf32> to vector<1x8xf32>
    %50 = arith.mulf %40, %48 : vector<1x8xf32>
    %51 = arith.subf %49, %50 : vector<1x8xf32>
    %52 = tpu.concatenate %48, %51 in 0 : vector<1x8xf32>, vector<1x8xf32> -> vector<2x8xf32>
    %cst_28 = arith.constant dense<0.000000e+00> : vector<2x32xf32>
    %53 = tpu.matmul %52, %23, %cst_28 {dimension_numbers = #tpu.dot_dimension_numbers<[1], [0], [0], [1], [0, 0, 1, 1], [], []>} : vector<2x8xf32>, vector<8x32xf32>, vector<2x32xf32> -> vector<2x32xf32>
    %54 = vector.extract_strided_slice %53 {offsets = [0, 0], sizes = [1, 32], strides = [1, 1]} : vector<2x32xf32> to vector<1x32xf32>
    %55 = vector.broadcast %54 : vector<1x32xf32> to vector<8x32xf32>
    %56 = arith.mulf %29, %55 : vector<8x32xf32>
    %57 = vector.extract_strided_slice %53 {offsets = [1, 0], sizes = [1, 32], strides = [1, 1]} : vector<2x32xf32> to vector<1x32xf32>
    %58 = vector.broadcast %57 : vector<1x32xf32> to vector<8x32xf32>
    %59 = arith.addf %56, %58 : vector<8x32xf32>
    %cst_29 = arith.constant 0.000000e+00 : f32
    %60 = vector.broadcast %cst_29 : f32 to vector<8x32xf32>
    %61 = arith.maximumf %59, %60 : vector<8x32xf32>
    %c272 = arith.constant 272 : index
    %c0_30 = arith.constant 0 : index
    %62 = vector.load %arg2[%c272, %c0_30] : memref<1488x128xf32, #tpu.memory_space<vmem>>, vector<96x32xf32>
    %c1_i32_31 = arith.constant 1 : i32
    %63 = tpu.dynamic_rotate %61 by %c1_i32_31 dim 0 : vector<8x32xf32>, i32 -> vector<8x32xf32>
    %c7_i32_32 = arith.constant 7 : i32
    %64 = tpu.dynamic_rotate %61 by %c7_i32_32 dim 0 : vector<8x32xf32>, i32 -> vector<8x32xf32>
    %65 = tpu.concatenate %63, %61, %64 in 1 : vector<8x32xf32>, vector<8x32xf32>, vector<8x32xf32> -> vector<8x96xf32>
    %66 = arith.mulf %65, %21 : vector<8x96xf32>
    %cst_33 = arith.constant dense<0.000000e+00> : vector<8x32xf32>
    %67 = tpu.matmul %66, %62, %cst_33 {dimension_numbers = #tpu.dot_dimension_numbers<[1], [0], [0], [1], [0, 0, 1, 1], [], []>} : vector<8x96xf32>, vector<96x32xf32>, vector<8x32xf32> -> vector<8x32xf32>
    %c32 = arith.constant 32 : index
    %c0_34 = arith.constant 0 : index
    %68 = vector.load %arg3[%c32, %c0_34] : memref<136x384xf32, #tpu.memory_space<vmem>>, vector<2x8xf32>
    %cst_35 = arith.constant dense<0.000000e+00> : vector<32xf32>
    %69 = vector.multi_reduction <add>, %67, %cst_35 [0] : vector<8x32xf32> to vector<32xf32>
    %70 = vector.shape_cast %69 : vector<32xf32> to vector<1x32xf32>
    %71 = arith.mulf %67, %67 : vector<8x32xf32>
    %cst_36 = arith.constant dense<0.000000e+00> : vector<32xf32>
    %72 = vector.multi_reduction <add>, %71, %cst_36 [0] : vector<8x32xf32> to vector<32xf32>
    %73 = vector.shape_cast %72 : vector<32xf32> to vector<1x32xf32>
    %74 = tpu.concatenate %70, %73 in 0 : vector<1x32xf32>, vector<1x32xf32> -> vector<2x32xf32>
    %cst_37 = arith.constant dense<0.000000e+00> : vector<2x8xf32>
    %75 = tpu.matmul %74, %22, %cst_37 {dimension_numbers = #tpu.dot_dimension_numbers<[1], [0], [0], [1], [0, 0, 1, 1], [], []>} : vector<2x32xf32>, vector<32x8xf32>, vector<2x8xf32> -> vector<2x8xf32>
    %cst_38 = arith.constant 3.125000e-02 : f32
    %76 = vector.broadcast %cst_38 : f32 to vector<2x8xf32>
    %77 = arith.mulf %75, %76 : vector<2x8xf32>
    %78 = vector.extract_strided_slice %77 {offsets = [0, 0], sizes = [1, 8], strides = [1, 1]} : vector<2x8xf32> to vector<1x8xf32>
    %79 = vector.extract_strided_slice %77 {offsets = [1, 0], sizes = [1, 8], strides = [1, 1]} : vector<2x8xf32> to vector<1x8xf32>
    %80 = arith.mulf %78, %78 : vector<1x8xf32>
    %81 = arith.subf %79, %80 : vector<1x8xf32>
    %82 = vector.extract_strided_slice %68 {offsets = [0, 0], sizes = [1, 8], strides = [1, 1]} : vector<2x8xf32> to vector<1x8xf32>
    %cst_39 = arith.constant 9.99999974E-6 : f32
    %83 = vector.broadcast %cst_39 : f32 to vector<1x8xf32>
    %84 = arith.addf %81, %83 : vector<1x8xf32>
    %85 = math.rsqrt %84 : vector<1x8xf32>
    %86 = arith.mulf %82, %85 : vector<1x8xf32>
    %87 = vector.extract_strided_slice %68 {offsets = [1, 0], sizes = [1, 8], strides = [1, 1]} : vector<2x8xf32> to vector<1x8xf32>
    %88 = arith.mulf %78, %86 : vector<1x8xf32>
    %89 = arith.subf %87, %88 : vector<1x8xf32>
    %90 = tpu.concatenate %86, %89 in 0 : vector<1x8xf32>, vector<1x8xf32> -> vector<2x8xf32>
    %cst_40 = arith.constant dense<0.000000e+00> : vector<2x32xf32>
    %91 = tpu.matmul %90, %23, %cst_40 {dimension_numbers = #tpu.dot_dimension_numbers<[1], [0], [0], [1], [0, 0, 1, 1], [], []>} : vector<2x8xf32>, vector<8x32xf32>, vector<2x32xf32> -> vector<2x32xf32>
    %92 = vector.extract_strided_slice %91 {offsets = [0, 0], sizes = [1, 32], strides = [1, 1]} : vector<2x32xf32> to vector<1x32xf32>
    %93 = vector.broadcast %92 : vector<1x32xf32> to vector<8x32xf32>
    %94 = arith.mulf %67, %93 : vector<8x32xf32>
    %95 = vector.extract_strided_slice %91 {offsets = [1, 0], sizes = [1, 32], strides = [1, 1]} : vector<2x32xf32> to vector<1x32xf32>
    %96 = vector.broadcast %95 : vector<1x32xf32> to vector<8x32xf32>
    %97 = arith.addf %94, %96 : vector<8x32xf32>
    %cst_41 = arith.constant 0.000000e+00 : f32
    %98 = vector.broadcast %cst_41 : f32 to vector<8x32xf32>
    %99 = arith.maximumf %97, %98 : vector<8x32xf32>
    %100 = arith.addf %99, %20 : vector<8x32xf32>
    %c408 = arith.constant 408 : index
    %c0_42 = arith.constant 0 : index
    %101 = vector.load %arg2[%c408, %c0_42] : memref<1488x128xf32, #tpu.memory_space<vmem>>, vector<32x64xf32>
    %c440 = arith.constant 440 : index
    %c0_43 = arith.constant 0 : index
    %102 = vector.load %arg2[%c440, %c0_43] : memref<1488x128xf32, #tpu.memory_space<vmem>>, vector<32x64xf32>
    %c48_44 = arith.constant 48 : index
    %c0_45 = arith.constant 0 : index
    %103 = vector.load %arg3[%c48_44, %c0_45] : memref<136x384xf32, #tpu.memory_space<vmem>>, vector<1x64xf32>
    %c472 = arith.constant 472 : index
    %c0_46 = arith.constant 0 : index
    %104 = vector.load %arg2[%c472, %c0_46] : memref<1488x128xf32, #tpu.memory_space<vmem>>, vector<16x16xf32>
    %cst_47 = arith.constant dense<0.000000e+00> : vector<8x64xf32>
    %105 = tpu.matmul %100, %101, %cst_47 {dimension_numbers = #tpu.dot_dimension_numbers<[1], [0], [0], [1], [0, 0, 1, 1], [], []>} : vector<8x32xf32>, vector<32x64xf32>, vector<8x64xf32> -> vector<8x64xf32>
    %cst_48 = arith.constant dense<0.000000e+00> : vector<8x64xf32>
    %106 = tpu.matmul %100, %102, %cst_48 {dimension_numbers = #tpu.dot_dimension_numbers<[1], [0], [0], [1], [0, 0, 1, 1], [], []>} : vector<8x32xf32>, vector<32x64xf32>, vector<8x64xf32> -> vector<8x64xf32>
    %107 = tpu.concatenate %105, %106 in 0 : vector<8x64xf32>, vector<8x64xf32> -> vector<16x64xf32>
    %cst_49 = arith.constant dense<0.000000e+00> : vector<16x64xf32>
    %108 = tpu.matmul %104, %107, %cst_49 {dimension_numbers = #tpu.dot_dimension_numbers<[1], [0], [0], [1], [0, 0, 1, 1], [], []>} : vector<16x16xf32>, vector<16x64xf32>, vector<16x64xf32> -> vector<16x64xf32>
    %109 = vector.broadcast %103 : vector<1x64xf32> to vector<16x64xf32>
    %110 = arith.addf %108, %109 : vector<16x64xf32>
    %cst_50 = arith.constant 0.000000e+00 : f32
    %111 = vector.broadcast %cst_50 : f32 to vector<16x64xf32>
    %112 = arith.maximumf %110, %111 : vector<16x64xf32>
    %c72 = arith.constant 72 : index
    %c0_51 = arith.constant 0 : index
    %113 = vector.load %arg3[%c72, %c0_51] : memref<136x384xf32, #tpu.memory_space<vmem>>, vector<16x192xf32>
    %c872 = arith.constant 872 : index
    %c0_52 = arith.constant 0 : index
    %114 = vector.load %arg2[%c872, %c0_52] : memref<1488x128xf32, #tpu.memory_space<vmem>>, vector<64x8xf32>
    %c936 = arith.constant 936 : index
    %c0_53 = arith.constant 0 : index
    %115 = vector.load %arg2[%c936, %c0_53] : memref<1488x128xf32, #tpu.memory_space<vmem>>, vector<8x64xf32>
    %c488 = arith.constant 488 : index
    %c0_54 = arith.constant 0 : index
    %116 = vector.load %arg2[%c488, %c0_54] : memref<1488x128xf32, #tpu.memory_space<vmem>>, vector<192x64xf32>
    %c1_i32_55 = arith.constant 1 : i32
    %117 = tpu.dynamic_rotate %112 by %c1_i32_55 dim 0 : vector<16x64xf32>, i32 -> vector<16x64xf32>
    %c15_i32 = arith.constant 15 : i32
    %118 = tpu.dynamic_rotate %112 by %c15_i32 dim 0 : vector<16x64xf32>, i32 -> vector<16x64xf32>
    %119 = tpu.concatenate %117, %112, %118 in 1 : vector<16x64xf32>, vector<16x64xf32>, vector<16x64xf32> -> vector<16x192xf32>
    %120 = arith.mulf %119, %113 : vector<16x192xf32>
    %cst_56 = arith.constant dense<0.000000e+00> : vector<16x64xf32>
    %121 = tpu.matmul %120, %116, %cst_56 {dimension_numbers = #tpu.dot_dimension_numbers<[1], [0], [0], [1], [0, 0, 1, 1], [], []>} : vector<16x192xf32>, vector<192x64xf32>, vector<16x64xf32> -> vector<16x64xf32>
    %c56 = arith.constant 56 : index
    %c0_57 = arith.constant 0 : index
    %122 = vector.load %arg3[%c56, %c0_57] : memref<136x384xf32, #tpu.memory_space<vmem>>, vector<2x8xf32>
    %cst_58 = arith.constant dense<0.000000e+00> : vector<64xf32>
    %123 = vector.multi_reduction <add>, %121, %cst_58 [0] : vector<16x64xf32> to vector<64xf32>
    %124 = vector.shape_cast %123 : vector<64xf32> to vector<1x64xf32>
    %125 = arith.mulf %121, %121 : vector<16x64xf32>
    %cst_59 = arith.constant dense<0.000000e+00> : vector<64xf32>
    %126 = vector.multi_reduction <add>, %125, %cst_59 [0] : vector<16x64xf32> to vector<64xf32>
    %127 = vector.shape_cast %126 : vector<64xf32> to vector<1x64xf32>
    %128 = tpu.concatenate %124, %127 in 0 : vector<1x64xf32>, vector<1x64xf32> -> vector<2x64xf32>
    %cst_60 = arith.constant dense<0.000000e+00> : vector<2x8xf32>
    %129 = tpu.matmul %128, %114, %cst_60 {dimension_numbers = #tpu.dot_dimension_numbers<[1], [0], [0], [1], [0, 0, 1, 1], [], []>} : vector<2x64xf32>, vector<64x8xf32>, vector<2x8xf32> -> vector<2x8xf32>
    %cst_61 = arith.constant 7.812500e-03 : f32
    %130 = vector.broadcast %cst_61 : f32 to vector<2x8xf32>
    %131 = arith.mulf %129, %130 : vector<2x8xf32>
    %132 = vector.extract_strided_slice %131 {offsets = [0, 0], sizes = [1, 8], strides = [1, 1]} : vector<2x8xf32> to vector<1x8xf32>
    %133 = vector.extract_strided_slice %131 {offsets = [1, 0], sizes = [1, 8], strides = [1, 1]} : vector<2x8xf32> to vector<1x8xf32>
    %134 = arith.mulf %132, %132 : vector<1x8xf32>
    %135 = arith.subf %133, %134 : vector<1x8xf32>
    %136 = vector.extract_strided_slice %122 {offsets = [0, 0], sizes = [1, 8], strides = [1, 1]} : vector<2x8xf32> to vector<1x8xf32>
    %cst_62 = arith.constant 9.99999974E-6 : f32
    %137 = vector.broadcast %cst_62 : f32 to vector<1x8xf32>
    %138 = arith.addf %135, %137 : vector<1x8xf32>
    %139 = math.rsqrt %138 : vector<1x8xf32>
    %140 = arith.mulf %136, %139 : vector<1x8xf32>
    %141 = vector.extract_strided_slice %122 {offsets = [1, 0], sizes = [1, 8], strides = [1, 1]} : vector<2x8xf32> to vector<1x8xf32>
    %142 = arith.mulf %132, %140 : vector<1x8xf32>
    %143 = arith.subf %141, %142 : vector<1x8xf32>
    %144 = tpu.concatenate %140, %143 in 0 : vector<1x8xf32>, vector<1x8xf32> -> vector<2x8xf32>
    %cst_63 = arith.constant dense<0.000000e+00> : vector<2x64xf32>
    %145 = tpu.matmul %144, %115, %cst_63 {dimension_numbers = #tpu.dot_dimension_numbers<[1], [0], [0], [1], [0, 0, 1, 1], [], []>} : vector<2x8xf32>, vector<8x64xf32>, vector<2x64xf32> -> vector<2x64xf32>
    %146 = vector.extract_strided_slice %145 {offsets = [0, 0], sizes = [1, 64], strides = [1, 1]} : vector<2x64xf32> to vector<1x64xf32>
    %147 = vector.broadcast %146 : vector<1x64xf32> to vector<16x64xf32>
    %148 = arith.mulf %121, %147 : vector<16x64xf32>
    %149 = vector.extract_strided_slice %145 {offsets = [1, 0], sizes = [1, 64], strides = [1, 1]} : vector<2x64xf32> to vector<1x64xf32>
    %150 = vector.broadcast %149 : vector<1x64xf32> to vector<16x64xf32>
    %151 = arith.addf %148, %150 : vector<16x64xf32>
    %cst_64 = arith.constant 0.000000e+00 : f32
    %152 = vector.broadcast %cst_64 : f32 to vector<16x64xf32>
    %153 = arith.maximumf %151, %152 : vector<16x64xf32>
    %c680 = arith.constant 680 : index
    %c0_65 = arith.constant 0 : index
    %154 = vector.load %arg2[%c680, %c0_65] : memref<1488x128xf32, #tpu.memory_space<vmem>>, vector<192x64xf32>
    %c1_i32_66 = arith.constant 1 : i32
    %155 = tpu.dynamic_rotate %153 by %c1_i32_66 dim 0 : vector<16x64xf32>, i32 -> vector<16x64xf32>
    %c15_i32_67 = arith.constant 15 : i32
    %156 = tpu.dynamic_rotate %153 by %c15_i32_67 dim 0 : vector<16x64xf32>, i32 -> vector<16x64xf32>
    %157 = tpu.concatenate %155, %153, %156 in 1 : vector<16x64xf32>, vector<16x64xf32>, vector<16x64xf32> -> vector<16x192xf32>
    %158 = arith.mulf %157, %113 : vector<16x192xf32>
    %cst_68 = arith.constant dense<0.000000e+00> : vector<16x64xf32>
    %159 = tpu.matmul %158, %154, %cst_68 {dimension_numbers = #tpu.dot_dimension_numbers<[1], [0], [0], [1], [0, 0, 1, 1], [], []>} : vector<16x192xf32>, vector<192x64xf32>, vector<16x64xf32> -> vector<16x64xf32>
    %c64 = arith.constant 64 : index
    %c0_69 = arith.constant 0 : index
    %160 = vector.load %arg3[%c64, %c0_69] : memref<136x384xf32, #tpu.memory_space<vmem>>, vector<2x8xf32>
    %cst_70 = arith.constant dense<0.000000e+00> : vector<64xf32>
    %161 = vector.multi_reduction <add>, %159, %cst_70 [0] : vector<16x64xf32> to vector<64xf32>
    %162 = vector.shape_cast %161 : vector<64xf32> to vector<1x64xf32>
    %163 = arith.mulf %159, %159 : vector<16x64xf32>
    %cst_71 = arith.constant dense<0.000000e+00> : vector<64xf32>
    %164 = vector.multi_reduction <add>, %163, %cst_71 [0] : vector<16x64xf32> to vector<64xf32>
    %165 = vector.shape_cast %164 : vector<64xf32> to vector<1x64xf32>
    %166 = tpu.concatenate %162, %165 in 0 : vector<1x64xf32>, vector<1x64xf32> -> vector<2x64xf32>
    %cst_72 = arith.constant dense<0.000000e+00> : vector<2x8xf32>
    %167 = tpu.matmul %166, %114, %cst_72 {dimension_numbers = #tpu.dot_dimension_numbers<[1], [0], [0], [1], [0, 0, 1, 1], [], []>} : vector<2x64xf32>, vector<64x8xf32>, vector<2x8xf32> -> vector<2x8xf32>
    %cst_73 = arith.constant 7.812500e-03 : f32
    %168 = vector.broadcast %cst_73 : f32 to vector<2x8xf32>
    %169 = arith.mulf %167, %168 : vector<2x8xf32>
    %170 = vector.extract_strided_slice %169 {offsets = [0, 0], sizes = [1, 8], strides = [1, 1]} : vector<2x8xf32> to vector<1x8xf32>
    %171 = vector.extract_strided_slice %169 {offsets = [1, 0], sizes = [1, 8], strides = [1, 1]} : vector<2x8xf32> to vector<1x8xf32>
    %172 = arith.mulf %170, %170 : vector<1x8xf32>
    %173 = arith.subf %171, %172 : vector<1x8xf32>
    %174 = vector.extract_strided_slice %160 {offsets = [0, 0], sizes = [1, 8], strides = [1, 1]} : vector<2x8xf32> to vector<1x8xf32>
    %cst_74 = arith.constant 9.99999974E-6 : f32
    %175 = vector.broadcast %cst_74 : f32 to vector<1x8xf32>
    %176 = arith.addf %173, %175 : vector<1x8xf32>
    %177 = math.rsqrt %176 : vector<1x8xf32>
    %178 = arith.mulf %174, %177 : vector<1x8xf32>
    %179 = vector.extract_strided_slice %160 {offsets = [1, 0], sizes = [1, 8], strides = [1, 1]} : vector<2x8xf32> to vector<1x8xf32>
    %180 = arith.mulf %170, %178 : vector<1x8xf32>
    %181 = arith.subf %179, %180 : vector<1x8xf32>
    %182 = tpu.concatenate %178, %181 in 0 : vector<1x8xf32>, vector<1x8xf32> -> vector<2x8xf32>
    %cst_75 = arith.constant dense<0.000000e+00> : vector<2x64xf32>
    %183 = tpu.matmul %182, %115, %cst_75 {dimension_numbers = #tpu.dot_dimension_numbers<[1], [0], [0], [1], [0, 0, 1, 1], [], []>} : vector<2x8xf32>, vector<8x64xf32>, vector<2x64xf32> -> vector<2x64xf32>
    %184 = vector.extract_strided_slice %183 {offsets = [0, 0], sizes = [1, 64], strides = [1, 1]} : vector<2x64xf32> to vector<1x64xf32>
    %185 = vector.broadcast %184 : vector<1x64xf32> to vector<16x64xf32>
    %186 = arith.mulf %159, %185 : vector<16x64xf32>
    %187 = vector.extract_strided_slice %183 {offsets = [1, 0], sizes = [1, 64], strides = [1, 1]} : vector<2x64xf32> to vector<1x64xf32>
    %188 = vector.broadcast %187 : vector<1x64xf32> to vector<16x64xf32>
    %189 = arith.addf %186, %188 : vector<16x64xf32>
    %cst_76 = arith.constant 0.000000e+00 : f32
    %190 = vector.broadcast %cst_76 : f32 to vector<16x64xf32>
    %191 = arith.maximumf %189, %190 : vector<16x64xf32>
    %192 = arith.addf %191, %112 : vector<16x64xf32>
    %c944 = arith.constant 944 : index
    %c0_77 = arith.constant 0 : index
    %193 = vector.load %arg2[%c944, %c0_77] : memref<1488x128xf32, #tpu.memory_space<vmem>>, vector<64x128xf32>
    %c1008 = arith.constant 1008 : index
    %c0_78 = arith.constant 0 : index
    %194 = vector.load %arg2[%c1008, %c0_78] : memref<1488x128xf32, #tpu.memory_space<vmem>>, vector<64x128xf32>
    %c88 = arith.constant 88 : index
    %c0_79 = arith.constant 0 : index
    %195 = vector.load %arg3[%c88, %c0_79] : memref<136x384xf32, #tpu.memory_space<vmem>>, vector<1x128xf32>
    %c1072 = arith.constant 1072 : index
    %c0_80 = arith.constant 0 : index
    %196 = vector.load %arg2[%c1072, %c0_80] : memref<1488x128xf32, #tpu.memory_space<vmem>>, vector<32x32xf32>
    %cst_81 = arith.constant dense<0.000000e+00> : vector<16x128xf32>
    %197 = tpu.matmul %192, %193, %cst_81 {dimension_numbers = #tpu.dot_dimension_numbers<[1], [0], [0], [1], [0, 0, 1, 1], [], []>} : vector<16x64xf32>, vector<64x128xf32>, vector<16x128xf32> -> vector<16x128xf32>
    %cst_82 = arith.constant dense<0.000000e+00> : vector<16x128xf32>
    %198 = tpu.matmul %192, %194, %cst_82 {dimension_numbers = #tpu.dot_dimension_numbers<[1], [0], [0], [1], [0, 0, 1, 1], [], []>} : vector<16x64xf32>, vector<64x128xf32>, vector<16x128xf32> -> vector<16x128xf32>
    %199 = tpu.concatenate %197, %198 in 0 : vector<16x128xf32>, vector<16x128xf32> -> vector<32x128xf32>
    %cst_83 = arith.constant dense<0.000000e+00> : vector<32x128xf32>
    %200 = tpu.matmul %196, %199, %cst_83 {dimension_numbers = #tpu.dot_dimension_numbers<[1], [0], [0], [1], [0, 0, 1, 1], [], []>} : vector<32x32xf32>, vector<32x128xf32>, vector<32x128xf32> -> vector<32x128xf32>
    %201 = vector.broadcast %195 : vector<1x128xf32> to vector<32x128xf32>
    %202 = arith.addf %200, %201 : vector<32x128xf32>
    %cst_84 = arith.constant 0.000000e+00 : f32
    %203 = vector.broadcast %cst_84 : f32 to vector<32x128xf32>
    %204 = arith.maximumf %202, %203 : vector<32x128xf32>
    %c1104 = arith.constant 1104 : index
    %c0_85 = arith.constant 0 : index
    %205 = vector.load %arg2[%c1104, %c0_85] : memref<1488x128xf32, #tpu.memory_space<vmem>>, vector<384x128xf32>
    %c104 = arith.constant 104 : index
    %c0_86 = arith.constant 0 : index
    %206 = vector.load %arg3[%c104, %c0_86] : memref<136x384xf32, #tpu.memory_space<vmem>>, vector<32x384xf32>
    %c96 = arith.constant 96 : index
    %c0_87 = arith.constant 0 : index
    %207 = vector.load %arg3[%c96, %c0_87] : memref<136x384xf32, #tpu.memory_space<vmem>>, vector<1x128xf32>
    %c1_i32_88 = arith.constant 1 : i32
    %208 = tpu.dynamic_rotate %204 by %c1_i32_88 dim 0 : vector<32x128xf32>, i32 -> vector<32x128xf32>
    %c31_i32 = arith.constant 31 : i32
    %209 = tpu.dynamic_rotate %204 by %c31_i32 dim 0 : vector<32x128xf32>, i32 -> vector<32x128xf32>
    %210 = tpu.concatenate %208, %204, %209 in 1 : vector<32x128xf32>, vector<32x128xf32>, vector<32x128xf32> -> vector<32x384xf32>
    %211 = arith.mulf %210, %206 : vector<32x384xf32>
    %cst_89 = arith.constant dense<0.000000e+00> : vector<32x128xf32>
    %212 = tpu.matmul %211, %205, %cst_89 {dimension_numbers = #tpu.dot_dimension_numbers<[1], [0], [0], [1], [0, 0, 1, 1], [], []>} : vector<32x384xf32>, vector<384x128xf32>, vector<32x128xf32> -> vector<32x128xf32>
    %213 = vector.broadcast %207 : vector<1x128xf32> to vector<32x128xf32>
    %214 = arith.addf %212, %213 : vector<32x128xf32>
    %cst_90 = arith.constant 0.000000e+00 : f32
    %215 = vector.broadcast %cst_90 : f32 to vector<32x128xf32>
    %216 = arith.subf %215, %214 : vector<32x128xf32>
    %217 = math.exp %216 : vector<32x128xf32>
    %cst_91 = arith.constant 1.000000e+00 : f32
    %218 = vector.broadcast %cst_91 : f32 to vector<32x128xf32>
    %219 = arith.addf %218, %217 : vector<32x128xf32>
    %220 = tpu.reciprocal %219 {approx = true} : vector<32x128xf32> -> vector<32x128xf32>
    %cst_92 = arith.constant 0.000000e+00 : f32
    %cst_93 = arith.constant 1.000000e+00 : f32
    %221 = vector.broadcast %cst_92 : f32 to vector<32x128xf32>
    %222 = arith.maximumf %221, %220 : vector<32x128xf32>
    %223 = vector.broadcast %cst_93 : f32 to vector<32x128xf32>
    %224 = arith.minimumf %223, %222 : vector<32x128xf32>
    %c0_94 = arith.constant 0 : index
    %c0_95 = arith.constant 0 : index
    %225 = vector.load %arg4[%c0_94, %c0_95] : memref<32x128xf32, #tpu.memory_space<vmem>>, vector<32x128xf32>
    tpu.vector_store %arg4[%c0_94, %c0_95], %224 {strides = array<i32>} : memref<32x128xf32, #tpu.memory_space<vmem>>, vector<32x128xf32>,
    return
  }
  func.func @transform_0(%arg0: i32) -> (i32, i32) {
    %c0_i32 = arith.constant 0 : i32
    %c0_i32_0 = arith.constant 0 : i32
    %c0_i32_1 = arith.constant 0 : i32
    return %c0_i32, %c0_i32_0 : i32, i32
  }
  func.func @transform_1(%arg0: i32) -> (i32, i32) {
    %c0_i32 = arith.constant 0 : i32
    %c0_i32_0 = arith.constant 0 : i32
    %c0_i32_1 = arith.constant 0 : i32
    return %c0_i32, %c0_i32_0 : i32, i32
  }
  func.func @transform_2(%arg0: i32) -> (i32, i32) {
    %c0_i32 = arith.constant 0 : i32
    %c0_i32_0 = arith.constant 0 : i32
    %c0_i32_1 = arith.constant 0 : i32
    return %c0_i32, %c0_i32_0 : i32, i32
  }
  func.func @transform_3(%arg0: i32) -> (i32, i32) {
    %c0_i32 = arith.constant 0 : i32
    %c0_i32_0 = arith.constant 0 : i32
    %c0_i32_1 = arith.constant 0 : i32
    return %c0_i32, %c0_i32_0 : i32, i32
  }
}

</mosaic_0001>

<llo_original>
// kernel: forward.1
$region0: #{forward.1}
  #allocation0 [shape = 'u32[]', space=smem, size = 0x4, offset = 0x4, fixed_abs, tag = 'smem constant byte address 0x4 - core index']
  #allocation1 [shape = 'u32[144,128]{1,0:T(1,128)}', space=vmem, size = 0x12000, scoped, tag = 'internal scratch']
  %s0 = inlined_call_operand.hbm [shape: f32[2,8], index: 0, kind: input, shape index: {}]
  %s1 = inlined_call_operand.hbm [shape: f32[1488,128], index: 1, kind: input, shape index: {}]
  %s2 = inlined_call_operand.hbm [shape: f32[136,384], index: 2, kind: input, shape index: {}]
  %s3 = inlined_call_operand.vmem [shape: f32[32,128], index: 3, kind: output, shape index: {}]
  %s4 = sld [smem:[#allocation0]]
  $region34: #{forward.1} parent=0
    _
  %s6 = ssub.s32 1, %s4
  %s7 = scalar_select 0, %s6, %s4
  $region1: #{forward.1} parent=0
    #allocation2 [shape = 'u8[1024]{0}', space=vmem, size = 0x400, scoped, tag = 'input window, operand 0, single buffered']
    #allocation3 [shape = 's32[1]{0}', space=sflag, size = 0x4, scoped, tag = 'scoped memory for forward.1']
    #allocation4 [shape = 'u8[761856]{0}', space=vmem, size = 0xba000, scoped, tag = 'input window, operand 1, single buffered']
    #allocation5 [shape = 's32[1]{0}', space=sflag, size = 0x4, scoped, tag = 'scoped memory for forward.1']
    #allocation6 [shape = 'u8[208896]{0}', space=vmem, size = 0x33000, scoped, tag = 'input window, operand 2, single buffered']
    %8 = vsyncpa [#allocation3], 0
    %9 = vsyncpa [#allocation5], 0
    // Predicated region
    $region2: #{forward.1} parent=1 // pred_check
      _
    $region3: #{forward.1} parent=1 // pred_check_branch
      %11 = sbr.rel (0) target = $region5
    $region4: #{forward.1} parent=1 // pred_region
      %s13 = ssub.s32 32, 32
      %14 = vsyncadd [#allocation3], %s13
      %s16 = sshll.u32 [#allocation2], 4
      %s17 = int_to_ptr.vmem [resolvable:$true] %s16
      %19 = dma.hbm_to_vmem [thread:$0]  %s0, 32, %s17, [#allocation3]
    $region5: #{forward.1} parent=1 // pred_fallthru
      _
    // Predicated region
    $region6: #{forward.1} parent=1 // pred_check
      _
    $region7: #{forward.1} parent=1 // pred_check_branch
      %21 = sbr.rel (0) target = $region9
    $region8: #{forward.1} parent=1 // pred_region
      %s23 = ssub.s32 23808, 23808
      %24 = vsyncadd [#allocation5], %s23
      %s25 = sshll.u32 [#allocation4], 4
      %s26 = int_to_ptr.vmem [resolvable:$true] %s25
      %31 = dma.hbm_to_vmem [thread:$0]  %s1, 23808, %s26, [#allocation5], 128, 128, 8
    $region9: #{forward.1} parent=1 // pred_fallthru
      _
    // Predicated region
    $region10: #{forward.1} parent=1 // pred_check
      _
    $region11: #{forward.1} parent=1 // pred_check_branch
      %33 = sbr.rel (0) target = $region13
    $region12: #{forward.1} parent=1 // pred_region
      %s35 = ssub.s32 6528, 6528
      %36 = vsyncadd [#allocation5], %s35
      %s37 = sshll.u32 [#allocation6], 4
      %s38 = int_to_ptr.vmem [resolvable:$true] %s37
      %43 = dma.hbm_to_vmem [thread:$0]  %s2, 6528, %s38, [#allocation5], 384, 384, 24
    $region13: #{forward.1} parent=1 // pred_fallthru
      _
    // Predicated region
    $region14: #{forward.1} parent=1 // pred_check
      _
    $region15: #{forward.1} parent=1 // pred_check_branch
      %45 = sbr.rel (0) target = $region17
    $region16: #{forward.1} parent=1 // pred_region
      %46 = dma.done [#allocation3], 32
    $region17: #{forward.1} parent=1 // pred_fallthru
      _
    // Predicated region
    $region18: #{forward.1} parent=1 // pred_check
      _
    $region19: #{forward.1} parent=1 // pred_check_branch
      %48 = sbr.rel (0) target = $region21
    $region20: #{forward.1} parent=1 // pred_region
      %49 = dma.done [#allocation5], 23808
    $region21: #{forward.1} parent=1 // pred_fallthru
      _
    // Predicated region
    $region22: #{forward.1} parent=1 // pred_check
      _
    $region23: #{forward.1} parent=1 // pred_check_branch
      %51 = sbr.rel (0) target = $region25
    $region24: #{forward.1} parent=1 // pred_region
      %52 = dma.done [#allocation5], 6528
    $region25: #{forward.1} parent=1 // pred_fallthru
      _
    %v53 = vld [vmem:[#allocation2] sm:$0x3]
    %v54 = vld [vmem:[#allocation4] sm:$0xff]
    %v55 = vld [vmem:[#allocation6] ss:$0 sm:$0xff]
    %vm56 = vcmask 64512
    %v58 = vsel %vm56, %v53, 0
    %60 = vmatprep.subr.mxu0 0.0
    %61 = vmatpush1.msra.mxu0 %v54
    %62 = vmatprep.subr.mxu0 0.0
    %63 = vmatpush1.msra.mxu0 0.0
    %64 = vmatprep.subr.mxu0 0.0
    %65 = vmatpush1.msra.mxu0 0.0
    %66 = vmatprep.subr.mxu0 0.0
    %67 = vmatpush1.msra.mxu0 0.0
    %68 = vmatprep.subr.mxu0 0.0
    %69 = vmatpush1.msra.mxu0 0.0
    %70 = vmatprep.subr.mxu0 0.0
    %71 = vmatpush1.msra.mxu0 0.0
    %72 = vmatprep.subr.mxu0 0.0
    %73 = vmatpush1.msra.mxu0 0.0
    %74 = vmatprep.subr.mxu0 0.0
    %75 = vmatpush1.msra.mxu0 0.0
    %76 = vmatprep.subr.mxu0 0.0
    %77 = vmatpush1.msra.mxu0 0.0
    %78 = vmatprep.subr.mxu0 0.0
    %79 = vmatpush1.msra.mxu0 0.0
    %80 = vmatprep.subr.mxu0 0.0
    %81 = vmatpush1.msra.mxu0 0.0
    %82 = vmatprep.subr.mxu0 0.0
    %83 = vmatpush1.msra.mxu0 0.0
    %84 = vmatprep.subr.mxu0 0.0
    %85 = vmatpush1.msra.mxu0 0.0
    %86 = vmatprep.subr.mxu0 0.0
    %87 = vmatpush1.msra.mxu0 0.0
    %88 = vmatprep.subr.mxu0 0.0
    %89 = vmatpush1.msra.mxu0 0.0
    %90 = vmatprep.subr.mxu0 0.0
    %91 = vmatpush1.msra.mxu0 0.0
    %92 = vmatprep.subr.mxu0 0.0
    %93 = vmatpush1.msra.mxu0 0.0
    %94 = vmatprep.subr.mxu0 0.0
    %95 = vmatpush1.msra.mxu0 0.0
    %96 = vmatprep.subr.mxu0 0.0
    %97 = vmatpush1.msra.mxu0 0.0
    %98 = vmatprep.subr.mxu0 0.0
    %99 = vmatpush1.msra.mxu0 0.0
    %100 = vmatprep.subr.mxu0 0.0
    %101 = vmatpush1.msra.mxu0 0.0
    %102 = vmatprep.subr.mxu0 0.0
    %103 = vmatpush1.msra.mxu0 0.0
    %104 = vmatprep.subr.mxu0 0.0
    %105 = vmatpush1.msra.mxu0 0.0
    %106 = vmatprep.subr.mxu0 0.0
    %107 = vmatpush1.msra.mxu0 0.0
    %108 = vmatprep.subr.mxu0 0.0
    %109 = vmatpush1.msra.mxu0 0.0
    %110 = vmatprep.subr.mxu0 0.0
    %111 = vmatpush1.msra.mxu0 0.0
    %112 = vmatprep.subr.mxu0 0.0
    %113 = vmatpush1.msra.mxu0 0.0
    %114 = vmatprep.subr.mxu0 0.0
    %115 = vmatpush1.msra.mxu0 0.0
    %116 = vmatprep.subr.mxu0 0.0
    %117 = vmatpush1.msra.mxu0 0.0
    %118 = vmatprep.subr.mxu0 0.0
    %119 = vmatpush1.msra.mxu0 0.0
    %120 = vmatprep.subr.mxu0 0.0
    %121 = vmatpush1.msra.mxu0 0.0
    %122 = vmatprep.subr.mxu0 0.0
    %123 = vmatpush1.msra.mxu0 0.0
    %124 = vmatprep.mubr.f32.mxu0 0.0
    %125 = vmatmul.mubr.f32.gmra.mrb[0].mxu0 %v58
    %v126 = vpop.f32.mrb[0].mxu0
    %v127 = vadd.f32 %v55, %v126
    %v128 = vpop.f32.mrb[0].mxu0
    %129 = vdwg.mxu0
    %v130 = vmax.f32 %v127, 0.0
    %v131 = vld [vmem:[#allocation4 + $0x28] sm:$0xff]
    %vm132 = vcmask 15360
    %v134 = vsel %vm132, %v131, 0
    %vm136 = vcmask 1041408
    %v138 = vsel %vm136, %v130, 0
    %140 = vmatprep.subr.mxu0 0.0
    %141 = vmatpush1.msra.mxu0 %v138
    %142 = vmatprep.subr.mxu0 0.0
    %143 = vmatpush1.msra.mxu0 0.0
    %144 = vmatprep.subr.mxu0 0.0
    %145 = vmatpush1.msra.mxu0 0.0
    %146 = vmatprep.subr.mxu0 0.0
    %147 = vmatpush1.msra.mxu0 0.0
    %148 = vmatprep.subr.mxu0 0.0
    %149 = vmatpush1.msra.mxu0 0.0
    %150 = vmatprep.subr.mxu0 0.0
    %151 = vmatpush1.msra.mxu0 0.0
    %152 = vmatprep.subr.mxu0 0.0
    %153 = vmatpush1.msra.mxu0 0.0
    %154 = vmatprep.subr.mxu0 0.0
    %155 = vmatpush1.msra.mxu0 0.0
    %156 = vmatprep.subr.mxu0 0.0
    %157 = vmatpush1.msra.mxu0 0.0
    %158 = vmatprep.subr.mxu0 0.0
    %159 = vmatpush1.msra.mxu0 0.0
    %160 = vmatprep.subr.mxu0 0.0
    %161 = vmatpush1.msra.mxu0 0.0
    %162 = vmatprep.subr.mxu0 0.0
    %163 = vmatpush1.msra.mxu0 0.0
    %164 = vmatprep.subr.mxu0 0.0
    %165 = vmatpush1.msra.mxu0 0.0
    %166 = vmatprep.subr.mxu0 0.0
    %167 = vmatpush1.msra.mxu0 0.0
    %168 = vmatprep.subr.mxu0 0.0
    %169 = vmatpush1.msra.mxu0 0.0
    %170 = vmatprep.subr.mxu0 0.0
    %171 = vmatpush1.msra.mxu0 0.0
    %172 = vmatprep.subr.mxu0 0.0
    %173 = vmatpush1.msra.mxu0 0.0
    %174 = vmatprep.subr.mxu0 0.0
    %175 = vmatpush1.msra.mxu0 0.0
    %176 = vmatprep.subr.mxu0 0.0
    %177 = vmatpush1.msra.mxu0 0.0
    %178 = vmatprep.subr.mxu0 0.0
    %179 = vmatpush1.msra.mxu0 0.0
    %180 = vmatprep.subr.mxu0 0.0
    %181 = vmatpush1.msra.mxu0 0.0
    %182 = vmatprep.subr.mxu0 0.0
    %183 = vmatpush1.msra.mxu0 0.0
    %184 = vmatprep.subr.mxu0 0.0
    %185 = vmatpush1.msra.mxu0 0.0
    %186 = vmatprep.subr.mxu0 0.0
    %187 = vmatpush1.msra.mxu0 0.0
    %188 = vmatprep.subr.mxu0 0.0
    %189 = vmatpush1.msra.mxu0 0.0
    %190 = vmatprep.subr.mxu0 0.0
    %191 = vmatpush1.msra.mxu0 0.0
    %192 = vmatprep.subr.mxu0 0.0
    %193 = vmatpush1.msra.mxu0 0.0
    %194 = vmatprep.subr.mxu0 0.0
    %195 = vmatpush1.msra.mxu0 0.0
    %196 = vmatprep.subr.mxu0 0.0
    %197 = vmatpush1.msra.mxu0 0.0
    %198 = vmatprep.subr.mxu0 0.0
    %199 = vmatpush1.msra.mxu0 0.0
    %200 = vmatprep.subr.mxu0 0.0
    %201 = vmatpush1.msra.mxu0 0.0
    %202 = vmatprep.subr.mxu0 0.0
    %203 = vmatpush1.msra.mxu0 0.0
    %204 = vmatprep.mubr.f32.mxu0 0.0
    %205 = vmatmul.mubr.f32.gmra.mrb[0].mxu0 %v134
    %v206 = vpop.f32.mrb[0].mxu0
    %v207 = vadd.f32 0.0, %v206
    %v208 = vpop.f32.mrb[0].mxu0
    %209 = vdwg.mxu0
    %v210 = vld [vmem:[#allocation4 + $0x8] sm:$0xff]
    %v211 = vld [vmem:[#allocation4 + $0x10] sm:$0xff]
    %v212 = vld [vmem:[#allocation4 + $0x18] sm:$0xff]
    %v213 = vld [vmem:[#allocation4 + $0x20] sm:$0xff]
    %v214 = vld [vmem:[#allocation6 + $0x18] ss:$0 sm:$0xff]
    %vm215 = vcmask 261120
    %v217 = vsel %vm215, %v207, 0
    %219 = vmatprep.subr.mxu0 0.0
    %220 = vmatpush1.msra.mxu0 %v210
    %221 = vmatprep.subr.mxu0 0.0
    %222 = vmatpush1.msra.mxu0 %v211
    %223 = vmatprep.subr.mxu0 0.0
    %224 = vmatpush1.msra.mxu0 %v212
    %225 = vmatprep.subr.mxu0 0.0
    %226 = vmatpush1.msra.mxu0 %v213
    %227 = vmatprep.subr.mxu0 0.0
    %228 = vmatpush1.msra.mxu0 0.0
    %229 = vmatprep.subr.mxu0 0.0
    %230 = vmatpush1.msra.mxu0 0.0
    %231 = vmatprep.subr.mxu0 0.0
    %232 = vmatpush1.msra.mxu0 0.0
    %233 = vmatprep.subr.mxu0 0.0
    %234 = vmatpush1.msra.mxu0 0.0
    %235 = vmatprep.subr.mxu0 0.0
    %236 = vmatpush1.msra.mxu0 0.0
    %237 = vmatprep.subr.mxu0 0.0
    %238 = vmatpush1.msra.mxu0 0.0
    %239 = vmatprep.subr.mxu0 0.0
    %240 = vmatpush1.msra.mxu0 0.0
    %241 = vmatprep.subr.mxu0 0.0
    %242 = vmatpush1.msra.mxu0 0.0
    %243 = vmatprep.subr.mxu0 0.0
    %244 = vmatpush1.msra.mxu0 0.0
    %245 = vmatprep.subr.mxu0 0.0
    %246 = vmatpush1.msra.mxu0 0.0
    %247 = vmatprep.subr.mxu0 0.0
    %248 = vmatpush1.msra.mxu0 0.0
    %249 = vmatprep.subr.mxu0 0.0
    %250 = vmatpush1.msra.mxu0 0.0
    %251 = vmatprep.subr.mxu0 0.0
    %252 = vmatpush1.msra.mxu0 0.0
    %253 = vmatprep.subr.mxu0 0.0
    %254 = vmatpush1.msra.mxu0 0.0
    %255 = vmatprep.subr.mxu0 0.0
    %256 = vmatpush1.msra.mxu0 0.0
    %257 = vmatprep.subr.mxu0 0.0
    %258 = vmatpush1.msra.mxu0 0.0
    %259 = vmatprep.subr.mxu0 0.0
    %260 = vmatpush1.msra.mxu0 0.0
    %261 = vmatprep.subr.mxu0 0.0
    %262 = vmatpush1.msra.mxu0 0.0
    %263 = vmatprep.subr.mxu0 0.0
    %264 = vmatpush1.msra.mxu0 0.0
    %265 = vmatprep.subr.mxu0 0.0
    %266 = vmatpush1.msra.mxu0 0.0
    %267 = vmatprep.subr.mxu0 0.0
    %268 = vmatpush1.msra.mxu0 0.0
    %269 = vmatprep.subr.mxu0 0.0
    %270 = vmatpush1.msra.mxu0 0.0
    %271 = vmatprep.subr.mxu0 0.0
    %272 = vmatpush1.msra.mxu0 0.0
    %273 = vmatprep.subr.mxu0 0.0
    %274 = vmatpush1.msra.mxu0 0.0
    %275 = vmatprep.subr.mxu0 0.0
    %276 = vmatpush1.msra.mxu0 0.0
    %277 = vmatprep.subr.mxu0 0.0
    %278 = vmatpush1.msra.mxu0 0.0
    %279 = vmatprep.subr.mxu0 0.0
    %280 = vmatpush1.msra.mxu0 0.0
    %281 = vmatprep.subr.mxu0 0.0
    %282 = vmatpush1.msra.mxu0 0.0
    %283 = vmatprep.mubr.f32.mxu0 0.0
    %284 = vmatmul.mubr.f32.gmra.mrb[0].mxu0 %v217
    %v285 = vpop.f32.mrb[0].mxu0
    %v286 = vadd.f32 %v214, %v285
    %v287 = vpop.f32.mrb[0].mxu0
    %288 = vdwg.mxu0
    %v289 = vld [vmem:[#allocation6 + $0x30] sm:$0xff]
    %v290 = vmul.f32 %v286, %v289
    %v291 = vld [vmem:[#allocation4 + $0x30] sm:$0xff]
    %v292 = vld [vmem:[#allocation4 + $0x38] sm:$0xff]
    %v293 = vld [vmem:[#allocation4 + $0x40] sm:$0xff]
    %v294 = vld [vmem:[#allocation4 + $0x48] sm:$0xff]
    %v295 = vld [vmem:[#allocation4 + $0x50] sm:$0xff]
    %v296 = vld [vmem:[#allocation4 + $0x58] sm:$0xff]
    %v297 = vld [vmem:[#allocation4 + $0x60] sm:$0xff]
    %v298 = vld [vmem:[#allocation4 + $0x68] sm:$0xff]
    %v299 = vld [vmem:[#allocation4 + $0x70] sm:$0xff]
    %v300 = vld [vmem:[#allocation4 + $0x78] sm:$0xff]
    %v301 = vld [vmem:[#allocation4 + $0x80] sm:$0xff]
    %v302 = vld [vmem:[#allocation4 + $0x88] sm:$0xff]
    %v303 = vld [vmem:[#allocation4 + $0x90] sm:$0xff]
    %v304 = vld [vmem:[#allocation4 + $0x98] sm:$0xff]
    %v305 = vld [vmem:[#allocation4 + $0xa0] sm:$0xff]
    %v306 = vld [vmem:[#allocation4 + $0xa8] sm:$0xff]
    %307 = vmatprep.subr.mxu0 0.0
    %308 = vmatpush1.msra.mxu0 %v291
    %309 = vmatprep.subr.mxu0 0.0
    %310 = vmatpush1.msra.mxu0 %v292
    %311 = vmatprep.subr.mxu0 0.0
    %312 = vmatpush1.msra.mxu0 %v293
    %313 = vmatprep.subr.mxu0 0.0
    %314 = vmatpush1.msra.mxu0 %v294
    %315 = vmatprep.subr.mxu0 0.0
    %316 = vmatpush1.msra.mxu0 %v295
    %317 = vmatprep.subr.mxu0 0.0
    %318 = vmatpush1.msra.mxu0 %v296
    %319 = vmatprep.subr.mxu0 0.0
    %320 = vmatpush1.msra.mxu0 %v297
    %321 = vmatprep.subr.mxu0 0.0
    %322 = vmatpush1.msra.mxu0 %v298
    %323 = vmatprep.subr.mxu0 0.0
    %324 = vmatpush1.msra.mxu0 %v299
    %325 = vmatprep.subr.mxu0 0.0
    %326 = vmatpush1.msra.mxu0 %v300
    %327 = vmatprep.subr.mxu0 0.0
    %328 = vmatpush1.msra.mxu0 %v301
    %329 = vmatprep.subr.mxu0 0.0
    %330 = vmatpush1.msra.mxu0 %v302
    %331 = vmatprep.subr.mxu0 0.0
    %332 = vmatpush1.msra.mxu0 %v303
    %333 = vmatprep.subr.mxu0 0.0
    %334 = vmatpush1.msra.mxu0 %v304
    %335 = vmatprep.subr.mxu0 0.0
    %336 = vmatpush1.msra.mxu0 %v305
    %337 = vmatprep.subr.mxu0 0.0
    %338 = vmatpush1.msra.mxu0 %v306
    %339 = vmatprep.subr.mxu0 0.0
    %340 = vmatpush1.msra.mxu0 0.0
    %341 = vmatprep.subr.mxu0 0.0
    %342 = vmatpush1.msra.mxu0 0.0
    %343 = vmatprep.subr.mxu0 0.0
    %344 = vmatpush1.msra.mxu0 0.0
    %345 = vmatprep.subr.mxu0 0.0
    %346 = vmatpush1.msra.mxu0 0.0
    %347 = vmatprep.subr.mxu0 0.0
    %348 = vmatpush1.msra.mxu0 0.0
    %349 = vmatprep.subr.mxu0 0.0
    %350 = vmatpush1.msra.mxu0 0.0
    %351 = vmatprep.subr.mxu0 0.0
    %352 = vmatpush1.msra.mxu0 0.0
    %353 = vmatprep.subr.mxu0 0.0
    %354 = vmatpush1.msra.mxu0 0.0
    %355 = vmatprep.subr.mxu0 0.0
    %356 = vmatpush1.msra.mxu0 0.0
    %357 = vmatprep.subr.mxu0 0.0
    %358 = vmatpush1.msra.mxu0 0.0
    %359 = vmatprep.subr.mxu0 0.0
    %360 = vmatpush1.msra.mxu0 0.0
    %361 = vmatprep.subr.mxu0 0.0
    %362 = vmatpush1.msra.mxu0 0.0
    %363 = vmatprep.subr.mxu0 0.0
    %364 = vmatpush1.msra.mxu0 0.0
    %365 = vmatprep.subr.mxu0 0.0
    %366 = vmatpush1.msra.mxu0 0.0
    %367 = vmatprep.subr.mxu0 0.0
    %368 = vmatpush1.msra.mxu0 0.0
    %369 = vmatprep.subr.mxu0 0.0
    %370 = vmatpush1.msra.mxu0 0.0
    %371 = vmatprep.mubr.f32.mxu0 0.0
    %372 = vmatmul.mubr.f32.gmra.mrb[0].mxu0 %v290
    %v373 = vpop.f32.mrb[0].mxu0
    %v374 = vadd.f32 0.0, %v373
    %v375 = vpop.f32.mrb[0].mxu0
    %376 = vdwg.mxu0
    %v377 = vmax.f32 %v374, 0.0
    %v378 = vld [vmem:[#allocation6 + $0x78] sm:$0xff]
    %v379 = vld [vmem:[#allocation4 + $0x170] sm:$0xff]
    %v380 = vld [vmem:[#allocation4 + $0x178] sm:$0xff]
    %v381 = vld [vmem:[#allocation4 + $0x180] sm:$0xff]
    %v382 = vld [vmem:[#allocation4 + $0x188] sm:$0xff]
    %v383 = vld [vmem:[#allocation4 + $0x190] sm:$0xff]
    %v384 = vld [vmem:[#allocation4 + $0xb0] sm:$0xff]
    %v385 = vld [vmem:[#allocation4 + $0xb8] sm:$0xff]
    %v386 = vld [vmem:[#allocation4 + $0xc0] sm:$0xff]
    %v387 = vld [vmem:[#allocation4 + $0xc8] sm:$0xff]
    %v388 = vld [vmem:[#allocation4 + $0xd0] sm:$0xff]
    %v389 = vld [vmem:[#allocation4 + $0xd8] sm:$0xff]
    %v390 = vld [vmem:[#allocation4 + $0xe0] sm:$0xff]
    %v391 = vld [vmem:[#allocation4 + $0xe8] sm:$0xff]
    %v392 = vld [vmem:[#allocation4 + $0xf0] sm:$0xff]
    %v393 = vld [vmem:[#allocation4 + $0xf8] sm:$0xff]
    %v394 = vld [vmem:[#allocation4 + $0x100] sm:$0xff]
    %v395 = vld [vmem:[#allocation4 + $0x108] sm:$0xff]
    %v396 = vrot.slane %v377, 7
    %v397 = vrot.slane %v377, 1
    %399 = vrot.lane.b32.xlu0 %v377, 32
    %v400 = vpop.permute.xlu0 %399
    %403 = vrot.lane.b32.xlu0 %v397, 64
    %v404 = vpop.permute.xlu0 %403
    %v406 = vsel %vm215, %v396, %v400
    %vm407 = vcmask 523264
    %v408 = vsel %vm407, %v406, %v404
    %v409 = vmul.f32 %v408, %v378
    %vm410 = vcmask 785408
    %v412 = vsel %vm410, %v409, 0
    %414 = vmatprep.subr.mxu0 0.0
    %415 = vmatpush1.msra.mxu0 %v384
    %416 = vmatprep.subr.mxu0 0.0
    %417 = vmatpush1.msra.mxu0 %v385
    %418 = vmatprep.subr.mxu0 0.0
    %419 = vmatpush1.msra.mxu0 %v386
    %420 = vmatprep.subr.mxu0 0.0
    %421 = vmatpush1.msra.mxu0 %v387
    %422 = vmatprep.subr.mxu0 0.0
    %423 = vmatpush1.msra.mxu0 %v388
    %424 = vmatprep.subr.mxu0 0.0
    %425 = vmatpush1.msra.mxu0 %v389
    %426 = vmatprep.subr.mxu0 0.0
    %427 = vmatpush1.msra.mxu0 %v390
    %428 = vmatprep.subr.mxu0 0.0
    %429 = vmatpush1.msra.mxu0 %v391
    %430 = vmatprep.subr.mxu0 0.0
    %431 = vmatpush1.msra.mxu0 %v392
    %432 = vmatprep.subr.mxu0 0.0
    %433 = vmatpush1.msra.mxu0 %v393
    %434 = vmatprep.subr.mxu0 0.0
    %435 = vmatpush1.msra.mxu0 %v394
    %436 = vmatprep.subr.mxu0 0.0
    %437 = vmatpush1.msra.mxu0 %v395
    %438 = vmatprep.subr.mxu0 0.0
    %439 = vmatpush1.msra.mxu0 0.0
    %440 = vmatprep.subr.mxu0 0.0
    %441 = vmatpush1.msra.mxu0 0.0
    %442 = vmatprep.subr.mxu0 0.0
    %443 = vmatpush1.msra.mxu0 0.0
    %444 = vmatprep.subr.mxu0 0.0
    %445 = vmatpush1.msra.mxu0 0.0
    %446 = vmatprep.subr.mxu0 0.0
    %447 = vmatpush1.msra.mxu0 0.0
    %448 = vmatprep.subr.mxu0 0.0
    %449 = vmatpush1.msra.mxu0 0.0
    %450 = vmatprep.subr.mxu0 0.0
    %451 = vmatpush1.msra.mxu0 0.0
    %452 = vmatprep.subr.mxu0 0.0
    %453 = vmatpush1.msra.mxu0 0.0
    %454 = vmatprep.subr.mxu0 0.0
    %455 = vmatpush1.msra.mxu0 0.0
    %456 = vmatprep.subr.mxu0 0.0
    %457 = vmatpush1.msra.mxu0 0.0
    %458 = vmatprep.subr.mxu0 0.0
    %459 = vmatpush1.msra.mxu0 0.0
    %460 = vmatprep.subr.mxu0 0.0
    %461 = vmatpush1.msra.mxu0 0.0
    %462 = vmatprep.subr.mxu0 0.0
    %463 = vmatpush1.msra.mxu0 0.0
    %464 = vmatprep.subr.mxu0 0.0
    %465 = vmatpush1.msra.mxu0 0.0
    %466 = vmatprep.subr.mxu0 0.0
    %467 = vmatpush1.msra.mxu0 0.0
    %468 = vmatprep.subr.mxu0 0.0
    %469 = vmatpush1.msra.mxu0 0.0
    %470 = vmatprep.subr.mxu0 0.0
    %471 = vmatpush1.msra.mxu0 0.0
    %472 = vmatprep.subr.mxu0 0.0
    %473 = vmatpush1.msra.mxu0 0.0
    %474 = vmatprep.subr.mxu0 0.0
    %475 = vmatpush1.msra.mxu0 0.0
    %476 = vmatprep.subr.mxu0 0.0
    %477 = vmatpush1.msra.mxu0 0.0
    %478 = vmatprep.mubr.f32.mxu0 0.0
    %479 = vmatmul.mubr.f32.gmra.mrb[0].mxu0 %v412
    %v480 = vpop.f32.mrb[0].mxu0
    %v481 = vadd.f32 0.0, %v480
    %v482 = vpop.f32.mrb[0].mxu0
    %483 = vdwg.mxu0
    %v484 = vld [vmem:[#allocation6 + $0x48] sm:$0x3]
    %v485 = vsel %vm215, %v481, 0.0
    %v486 = vrot.slane %v485, 4
    %v487 = vadd.f32 %v485, %v486
    %v488 = vrot.slane %v487, 2
    %v489 = vadd.f32 %v487, %v488
    %v490 = vrot.slane %v489, 1
    %v491 = vadd.f32 %v489, %v490
    %v492 = vmul.f32 %v481, %v481
    %v493 = vsel %vm215, %v492, 0.0
    %v494 = vrot.slane %v493, 4
    %v495 = vadd.f32 %v493, %v494
    %v496 = vrot.slane %v495, 2
    %v497 = vadd.f32 %v495, %v496
    %v498 = vrot.slane %v497, 1
    %v499 = vadd.f32 %v497, %v498
    %vm500 = vcmask 1040384
    %v501 = vsel %vm500, %v491, %v499
    %v503 = vsel %vm215, %v501, 0
    %505 = vmatprep.subr.mxu0 0.0
    %506 = vmatpush1.msra.mxu0 %v379
    %507 = vmatprep.subr.mxu0 0.0
    %508 = vmatpush1.msra.mxu0 %v380
    %509 = vmatprep.subr.mxu0 0.0
    %510 = vmatpush1.msra.mxu0 %v381
    %511 = vmatprep.subr.mxu0 0.0
    %512 = vmatpush1.msra.mxu0 %v382
    %513 = vmatprep.subr.mxu0 0.0
    %514 = vmatpush1.msra.mxu0 0.0
    %515 = vmatprep.subr.mxu0 0.0
    %516 = vmatpush1.msra.mxu0 0.0
    %517 = vmatprep.subr.mxu0 0.0
    %518 = vmatpush1.msra.mxu0 0.0
    %519 = vmatprep.subr.mxu0 0.0
    %520 = vmatpush1.msra.mxu0 0.0
    %521 = vmatprep.subr.mxu0 0.0
    %522 = vmatpush1.msra.mxu0 0.0
    %523 = vmatprep.subr.mxu0 0.0
    %524 = vmatpush1.msra.mxu0 0.0
    %525 = vmatprep.subr.mxu0 0.0
    %526 = vmatpush1.msra.mxu0 0.0
    %527 = vmatprep.subr.mxu0 0.0
    %528 = vmatpush1.msra.mxu0 0.0
    %529 = vmatprep.subr.mxu0 0.0
    %530 = vmatpush1.msra.mxu0 0.0
    %531 = vmatprep.subr.mxu0 0.0
    %532 = vmatpush1.msra.mxu0 0.0
    %533 = vmatprep.subr.mxu0 0.0
    %534 = vmatpush1.msra.mxu0 0.0
    %535 = vmatprep.subr.mxu0 0.0
    %536 = vmatpush1.msra.mxu0 0.0
    %537 = vmatprep.subr.mxu0 0.0
    %538 = vmatpush1.msra.mxu0 0.0
    %539 = vmatprep.subr.mxu0 0.0
    %540 = vmatpush1.msra.mxu0 0.0
    %541 = vmatprep.subr.mxu0 0.0
    %542 = vmatpush1.msra.mxu0 0.0
    %543 = vmatprep.subr.mxu0 0.0
    %544 = vmatpush1.msra.mxu0 0.0
    %545 = vmatprep.subr.mxu0 0.0
    %546 = vmatpush1.msra.mxu0 0.0
    %547 = vmatprep.subr.mxu0 0.0
    %548 = vmatpush1.msra.mxu0 0.0
    %549 = vmatprep.subr.mxu0 0.0
    %550 = vmatpush1.msra.mxu0 0.0
    %551 = vmatprep.subr.mxu0 0.0
    %552 = vmatpush1.msra.mxu0 0.0
    %553 = vmatprep.subr.mxu0 0.0
    %554 = vmatpush1.msra.mxu0 0.0
    %555 = vmatprep.subr.mxu0 0.0
    %556 = vmatpush1.msra.mxu0 0.0
    %557 = vmatprep.subr.mxu0 0.0
    %558 = vmatpush1.msra.mxu0 0.0
    %559 = vmatprep.subr.mxu0 0.0
    %560 = vmatpush1.msra.mxu0 0.0
    %561 = vmatprep.subr.mxu0 0.0
    %562 = vmatpush1.msra.mxu0 0.0
    %563 = vmatprep.subr.mxu0 0.0
    %564 = vmatpush1.msra.mxu0 0.0
    %565 = vmatprep.subr.mxu0 0.0
    %566 = vmatpush1.msra.mxu0 0.0
    %567 = vmatprep.subr.mxu0 0.0
    %568 = vmatpush1.msra.mxu0 0.0
    %569 = vmatprep.mubr.f32.mxu0 0.0
    %570 = vmatmul.mubr.f32.gmra.mrb[0].mxu0 %v503
    %v571 = vpop.f32.mrb[0].mxu0
    %v572 = vadd.f32 0.0, %v571
    %v573 = vpop.f32.mrb[0].mxu0
    %574 = vdwg.mxu0
    %v575 = vmul.f32 %v572, 0.03125
    %v576 = vmul.f32 %v575, %v575
    %v578 = vrot.slane %v576, 7
    %v580 = vsub.f32 %v575, %v578
    %v581 = vadd.f32 %v580, 1e-05
    %v582 = vrsqrt.pop %v581
    %v584 = vrot.slane %v582, 1
    %v586 = vmul.f32 %v484, %v584
    %v587 = vmul.f32 %v575, %v586
    %v589 = vrot.slane %v587, 7
    %v591 = vsub.f32 %v484, %v589
    %v592 = vsel %vm500, %v586, %v591
    %v594 = vsel %vm56, %v592, 0
    %596 = vmatprep.subr.mxu0 0.0
    %597 = vmatpush1.msra.mxu0 %v383
    %598 = vmatprep.subr.mxu0 0.0
    %599 = vmatpush1.msra.mxu0 0.0
    %600 = vmatprep.subr.mxu0 0.0
    %601 = vmatpush1.msra.mxu0 0.0
    %602 = vmatprep.subr.mxu0 0.0
    %603 = vmatpush1.msra.mxu0 0.0
    %604 = vmatprep.subr.mxu0 0.0
    %605 = vmatpush1.msra.mxu0 0.0
    %606 = vmatprep.subr.mxu0 0.0
    %607 = vmatpush1.msra.mxu0 0.0
    %608 = vmatprep.subr.mxu0 0.0
    %609 = vmatpush1.msra.mxu0 0.0
    %610 = vmatprep.subr.mxu0 0.0
    %611 = vmatpush1.msra.mxu0 0.0
    %612 = vmatprep.subr.mxu0 0.0
    %613 = vmatpush1.msra.mxu0 0.0
    %614 = vmatprep.subr.mxu0 0.0
    %615 = vmatpush1.msra.mxu0 0.0
    %616 = vmatprep.subr.mxu0 0.0
    %617 = vmatpush1.msra.mxu0 0.0
    %618 = vmatprep.subr.mxu0 0.0
    %619 = vmatpush1.msra.mxu0 0.0
    %620 = vmatprep.subr.mxu0 0.0
    %621 = vmatpush1.msra.mxu0 0.0
    %622 = vmatprep.subr.mxu0 0.0
    %623 = vmatpush1.msra.mxu0 0.0
    %624 = vmatprep.subr.mxu0 0.0
    %625 = vmatpush1.msra.mxu0 0.0
    %626 = vmatprep.subr.mxu0 0.0
    %627 = vmatpush1.msra.mxu0 0.0
    %628 = vmatprep.subr.mxu0 0.0
    %629 = vmatpush1.msra.mxu0 0.0
    %630 = vmatprep.subr.mxu0 0.0
    %631 = vmatpush1.msra.mxu0 0.0
    %632 = vmatprep.subr.mxu0 0.0
    %633 = vmatpush1.msra.mxu0 0.0
    %634 = vmatprep.subr.mxu0 0.0
    %635 = vmatpush1.msra.mxu0 0.0
    %636 = vmatprep.subr.mxu0 0.0
    %637 = vmatpush1.msra.mxu0 0.0
    %638 = vmatprep.subr.mxu0 0.0
    %639 = vmatpush1.msra.mxu0 0.0
    %640 = vmatprep.subr.mxu0 0.0
    %641 = vmatpush1.msra.mxu0 0.0
    %642 = vmatprep.subr.mxu0 0.0
    %643 = vmatpush1.msra.mxu0 0.0
    %644 = vmatprep.subr.mxu0 0.0
    %645 = vmatpush1.msra.mxu0 0.0
    %646 = vmatprep.subr.mxu0 0.0
    %647 = vmatpush1.msra.mxu0 0.0
    %648 = vmatprep.subr.mxu0 0.0
    %649 = vmatpush1.msra.mxu0 0.0
    %650 = vmatprep.subr.mxu0 0.0
    %651 = vmatpush1.msra.mxu0 0.0
    %652 = vmatprep.subr.mxu0 0.0
    %653 = vmatpush1.msra.mxu0 0.0
    %654 = vmatprep.subr.mxu0 0.0
    %655 = vmatpush1.msra.mxu0 0.0
    %656 = vmatprep.subr.mxu0 0.0
    %657 = vmatpush1.msra.mxu0 0.0
    %658 = vmatprep.subr.mxu0 0.0
    %659 = vmatpush1.msra.mxu0 0.0
    %660 = vmatprep.mubr.f32.mxu0 0.0
    %661 = vmatmul.mubr.f32.gmra.mrb[0].mxu0 %v594
    %v662 = vpop.f32.mrb[0].mxu0
    %v663 = vadd.f32 0.0, %v662
    %v664 = vpop.f32.mrb[0].mxu0
    %665 = vdwg.mxu0
    %v666 = vlaneseq
    %v667 = vshrl.u32 %v666, 7
    %v668 = vsub.s32 0, %v667
    %v669 = vrot.slane %v663, %v668
    %v670 = vmul.f32 %v481, %v669
    %v671 = vlaneseq
    %v672 = vshrl.u32 %v671, 7
    %v673 = vsub.s32 1, %v672
    %v674 = vrot.slane %v663, %v673
    %v675 = vadd.f32 %v670, %v674
    %v676 = vmax.f32 %v675, 0.0
    %v677 = vld [vmem:[#allocation4 + $0x110] sm:$0xff]
    %v678 = vld [vmem:[#allocation4 + $0x118] sm:$0xff]
    %v679 = vld [vmem:[#allocation4 + $0x120] sm:$0xff]
    %v680 = vld [vmem:[#allocation4 + $0x128] sm:$0xff]
    %v681 = vld [vmem:[#allocation4 + $0x130] sm:$0xff]
    %v682 = vld [vmem:[#allocation4 + $0x138] sm:$0xff]
    %v683 = vld [vmem:[#allocation4 + $0x140] sm:$0xff]
    %v684 = vld [vmem:[#allocation4 + $0x148] sm:$0xff]
    %v685 = vld [vmem:[#allocation4 + $0x150] sm:$0xff]
    %v686 = vld [vmem:[#allocation4 + $0x158] sm:$0xff]
    %v687 = vld [vmem:[#allocation4 + $0x160] sm:$0xff]
    %v688 = vld [vmem:[#allocation4 + $0x168] sm:$0xff]
    %v689 = vrot.slane %v676, 7
    %v690 = vrot.slane %v676, 1
    %692 = vrot.lane.b32.xlu0 %v676, 32
    %v693 = vpop.permute.xlu0 %692
    %696 = vrot.lane.b32.xlu0 %v690, 64
    %v697 = vpop.permute.xlu0 %696
    %v699 = vsel %vm215, %v689, %v693
    %v700 = vsel %vm407, %v699, %v697
    %v701 = vmul.f32 %v700, %v378
    %v703 = vsel %vm410, %v701, 0
    %705 = vmatprep.subr.mxu0 0.0
    %706 = vmatpush1.msra.mxu0 %v677
    %707 = vmatprep.subr.mxu0 0.0
    %708 = vmatpush1.msra.mxu0 %v678
    %709 = vmatprep.subr.mxu0 0.0
    %710 = vmatpush1.msra.mxu0 %v679
    %711 = vmatprep.subr.mxu0 0.0
    %712 = vmatpush1.msra.mxu0 %v680
    %713 = vmatprep.subr.mxu0 0.0
    %714 = vmatpush1.msra.mxu0 %v681
    %715 = vmatprep.subr.mxu0 0.0
    %716 = vmatpush1.msra.mxu0 %v682
    %717 = vmatprep.subr.mxu0 0.0
    %718 = vmatpush1.msra.mxu0 %v683
    %719 = vmatprep.subr.mxu0 0.0
    %720 = vmatpush1.msra.mxu0 %v684
    %721 = vmatprep.subr.mxu0 0.0
    %722 = vmatpush1.msra.mxu0 %v685
    %723 = vmatprep.subr.mxu0 0.0
    %724 = vmatpush1.msra.mxu0 %v686
    %725 = vmatprep.subr.mxu0 0.0
    %726 = vmatpush1.msra.mxu0 %v687
    %727 = vmatprep.subr.mxu0 0.0
    %728 = vmatpush1.msra.mxu0 %v688
    %729 = vmatprep.subr.mxu0 0.0
    %730 = vmatpush1.msra.mxu0 0.0
    %731 = vmatprep.subr.mxu0 0.0
    %732 = vmatpush1.msra.mxu0 0.0
    %733 = vmatprep.subr.mxu0 0.0
    %734 = vmatpush1.msra.mxu0 0.0
    %735 = vmatprep.subr.mxu0 0.0
    %736 = vmatpush1.msra.mxu0 0.0
    %737 = vmatprep.subr.mxu0 0.0
    %738 = vmatpush1.msra.mxu0 0.0
    %739 = vmatprep.subr.mxu0 0.0
    %740 = vmatpush1.msra.mxu0 0.0
    %741 = vmatprep.subr.mxu0 0.0
    %742 = vmatpush1.msra.mxu0 0.0
    %743 = vmatprep.subr.mxu0 0.0
    %744 = vmatpush1.msra.mxu0 0.0
    %745 = vmatprep.subr.mxu0 0.0
    %746 = vmatpush1.msra.mxu0 0.0
    %747 = vmatprep.subr.mxu0 0.0
    %748 = vmatpush1.msra.mxu0 0.0
    %749 = vmatprep.subr.mxu0 0.0
    %750 = vmatpush1.msra.mxu0 0.0
    %751 = vmatprep.subr.mxu0 0.0
    %752 = vmatpush1.msra.mxu0 0.0
    %753 = vmatprep.subr.mxu0 0.0
    %754 = vmatpush1.msra.mxu0 0.0
    %755 = vmatprep.subr.mxu0 0.0
    %756 = vmatpush1.msra.mxu0 0.0
    %757 = vmatprep.subr.mxu0 0.0
    %758 = vmatpush1.msra.mxu0 0.0
    %759 = vmatprep.subr.mxu0 0.0
    %760 = vmatpush1.msra.mxu0 0.0
    %761 = vmatprep.subr.mxu0 0.0
    %762 = vmatpush1.msra.mxu0 0.0
    %763 = vmatprep.subr.mxu0 0.0
    %764 = vmatpush1.msra.mxu0 0.0
    %765 = vmatprep.subr.mxu0 0.0
    %766 = vmatpush1.msra.mxu0 0.0
    %767 = vmatprep.subr.mxu0 0.0
    %768 = vmatpush1.msra.mxu0 0.0
    %769 = vmatprep.mubr.f32.mxu0 0.0
    %770 = vmatmul.mubr.f32.gmra.mrb[0].mxu0 %v703
    %v771 = vpop.f32.mrb[0].mxu0
    %v772 = vadd.f32 0.0, %v771
    %v773 = vpop.f32.mrb[0].mxu0
    %774 = vdwg.mxu0
    %v775 = vld [vmem:[#allocation6 + $0x60] sm:$0x3]
    %v776 = vsel %vm215, %v772, 0.0
    %v777 = vrot.slane %v776, 4
    %v778 = vadd.f32 %v776, %v777
    %v779 = vrot.slane %v778, 2
    %v780 = vadd.f32 %v778, %v779
    %v781 = vrot.slane %v780, 1
    %v782 = vadd.f32 %v780, %v781
    %v783 = vmul.f32 %v772, %v772
    %v784 = vsel %vm215, %v783, 0.0
    %v785 = vrot.slane %v784, 4
    %v786 = vadd.f32 %v784, %v785
    %v787 = vrot.slane %v786, 2
    %v788 = vadd.f32 %v786, %v787
    %v789 = vrot.slane %v788, 1
    %v790 = vadd.f32 %v788, %v789
    %v791 = vsel %vm500, %v782, %v790
    %v793 = vsel %vm215, %v791, 0
    %795 = vmatprep.subr.mxu0 0.0
    %796 = vmatpush1.msra.mxu0 %v379
    %797 = vmatprep.subr.mxu0 0.0
    %798 = vmatpush1.msra.mxu0 %v380
    %799 = vmatprep.subr.mxu0 0.0
    %800 = vmatpush1.msra.mxu0 %v381
    %801 = vmatprep.subr.mxu0 0.0
    %802 = vmatpush1.msra.mxu0 %v382
    %803 = vmatprep.subr.mxu0 0.0
    %804 = vmatpush1.msra.mxu0 0.0
    %805 = vmatprep.subr.mxu0 0.0
    %806 = vmatpush1.msra.mxu0 0.0
    %807 = vmatprep.subr.mxu0 0.0
    %808 = vmatpush1.msra.mxu0 0.0
    %809 = vmatprep.subr.mxu0 0.0
    %810 = vmatpush1.msra.mxu0 0.0
    %811 = vmatprep.subr.mxu0 0.0
    %812 = vmatpush1.msra.mxu0 0.0
    %813 = vmatprep.subr.mxu0 0.0
    %814 = vmatpush1.msra.mxu0 0.0
    %815 = vmatprep.subr.mxu0 0.0
    %816 = vmatpush1.msra.mxu0 0.0
    %817 = vmatprep.subr.mxu0 0.0
    %818 = vmatpush1.msra.mxu0 0.0
    %819 = vmatprep.subr.mxu0 0.0
    %820 = vmatpush1.msra.mxu0 0.0
    %821 = vmatprep.subr.mxu0 0.0
    %822 = vmatpush1.msra.mxu0 0.0
    %823 = vmatprep.subr.mxu0 0.0
    %824 = vmatpush1.msra.mxu0 0.0
    %825 = vmatprep.subr.mxu0 0.0
    %826 = vmatpush1.msra.mxu0 0.0
    %827 = vmatprep.subr.mxu0 0.0
    %828 = vmatpush1.msra.mxu0 0.0
    %829 = vmatprep.subr.mxu0 0.0
    %830 = vmatpush1.msra.mxu0 0.0
    %831 = vmatprep.subr.mxu0 0.0
    %832 = vmatpush1.msra.mxu0 0.0
    %833 = vmatprep.subr.mxu0 0.0
    %834 = vmatpush1.msra.mxu0 0.0
    %835 = vmatprep.subr.mxu0 0.0
    %836 = vmatpush1.msra.mxu0 0.0
    %837 = vmatprep.subr.mxu0 0.0
    %838 = vmatpush1.msra.mxu0 0.0
    %839 = vmatprep.subr.mxu0 0.0
    %840 = vmatpush1.msra.mxu0 0.0
    %841 = vmatprep.subr.mxu0 0.0
    %842 = vmatpush1.msra.mxu0 0.0
    %843 = vmatprep.subr.mxu0 0.0
    %844 = vmatpush1.msra.mxu0 0.0
    %845 = vmatprep.subr.mxu0 0.0
    %846 = vmatpush1.msra.mxu0 0.0
    %847 = vmatprep.subr.mxu0 0.0
    %848 = vmatpush1.msra.mxu0 0.0
    %849 = vmatprep.subr.mxu0 0.0
    %850 = vmatpush1.msra.mxu0 0.0
    %851 = vmatprep.subr.mxu0 0.0
    %852 = vmatpush1.msra.mxu0 0.0
    %853 = vmatprep.subr.mxu0 0.0
    %854 = vmatpush1.msra.mxu0 0.0
    %855 = vmatprep.subr.mxu0 0.0
    %856 = vmatpush1.msra.mxu0 0.0
    %857 = vmatprep.subr.mxu0 0.0
    %858 = vmatpush1.msra.mxu0 0.0
    %859 = vmatprep.mubr.f32.mxu0 0.0
    %860 = vmatmul.mubr.f32.gmra.mrb[0].mxu0 %v793
    %v861 = vpop.f32.mrb[0].mxu0
    %v862 = vadd.f32 0.0, %v861
    %v863 = vpop.f32.mrb[0].mxu0
    %864 = vdwg.mxu0
    %v865 = vmul.f32 %v862, 0.03125
    %v866 = vmul.f32 %v865, %v865
    %v868 = vrot.slane %v866, 7
    %v870 = vsub.f32 %v865, %v868
    %v871 = vadd.f32 %v870, 1e-05
    %v872 = vrsqrt.pop %v871
    %v874 = vrot.slane %v872, 1
    %v876 = vmul.f32 %v775, %v874
    %v877 = vmul.f32 %v865, %v876
    %v879 = vrot.slane %v877, 7
    %v881 = vsub.f32 %v775, %v879
    %v882 = vsel %vm500, %v876, %v881
    %v884 = vsel %vm56, %v882, 0
    %886 = vmatprep.subr.mxu0 0.0
    %887 = vmatpush1.msra.mxu0 %v383
    %888 = vmatprep.subr.mxu0 0.0
    %889 = vmatpush1.msra.mxu0 0.0
    %890 = vmatprep.subr.mxu0 0.0
    %891 = vmatpush1.msra.mxu0 0.0
    %892 = vmatprep.subr.mxu0 0.0
    %893 = vmatpush1.msra.mxu0 0.0
    %894 = vmatprep.subr.mxu0 0.0
    %895 = vmatpush1.msra.mxu0 0.0
    %896 = vmatprep.subr.mxu0 0.0
    %897 = vmatpush1.msra.mxu0 0.0
    %898 = vmatprep.subr.mxu0 0.0
    %899 = vmatpush1.msra.mxu0 0.0
    %900 = vmatprep.subr.mxu0 0.0
    %901 = vmatpush1.msra.mxu0 0.0
    %902 = vmatprep.subr.mxu0 0.0
    %903 = vmatpush1.msra.mxu0 0.0
    %904 = vmatprep.subr.mxu0 0.0
    %905 = vmatpush1.msra.mxu0 0.0
    %906 = vmatprep.subr.mxu0 0.0
    %907 = vmatpush1.msra.mxu0 0.0
    %908 = vmatprep.subr.mxu0 0.0
    %909 = vmatpush1.msra.mxu0 0.0
    %910 = vmatprep.subr.mxu0 0.0
    %911 = vmatpush1.msra.mxu0 0.0
    %912 = vmatprep.subr.mxu0 0.0
    %913 = vmatpush1.msra.mxu0 0.0
    %914 = vmatprep.subr.mxu0 0.0
    %915 = vmatpush1.msra.mxu0 0.0
    %916 = vmatprep.subr.mxu0 0.0
    %917 = vmatpush1.msra.mxu0 0.0
    %918 = vmatprep.subr.mxu0 0.0
    %919 = vmatpush1.msra.mxu0 0.0
    %920 = vmatprep.subr.mxu0 0.0
    %921 = vmatpush1.msra.mxu0 0.0
    %922 = vmatprep.subr.mxu0 0.0
    %923 = vmatpush1.msra.mxu0 0.0
    %924 = vmatprep.subr.mxu0 0.0
    %925 = vmatpush1.msra.mxu0 0.0
    %926 = vmatprep.subr.mxu0 0.0
    %927 = vmatpush1.msra.mxu0 0.0
    %928 = vmatprep.subr.mxu0 0.0
    %929 = vmatpush1.msra.mxu0 0.0
    %930 = vmatprep.subr.mxu0 0.0
    %931 = vmatpush1.msra.mxu0 0.0
    %932 = vmatprep.subr.mxu0 0.0
    %933 = vmatpush1.msra.mxu0 0.0
    %934 = vmatprep.subr.mxu0 0.0
    %935 = vmatpush1.msra.mxu0 0.0
    %936 = vmatprep.subr.mxu0 0.0
    %937 = vmatpush1.msra.mxu0 0.0
    %938 = vmatprep.subr.mxu0 0.0
    %939 = vmatpush1.msra.mxu0 0.0
    %940 = vmatprep.subr.mxu0 0.0
    %941 = vmatpush1.msra.mxu0 0.0
    %942 = vmatprep.subr.mxu0 0.0
    %943 = vmatpush1.msra.mxu0 0.0
    %944 = vmatprep.subr.mxu0 0.0
    %945 = vmatpush1.msra.mxu0 0.0
    %946 = vmatprep.subr.mxu0 0.0
    %947 = vmatpush1.msra.mxu0 0.0
    %948 = vmatprep.subr.mxu0 0.0
    %949 = vmatpush1.msra.mxu0 0.0
    %950 = vmatprep.mubr.f32.mxu0 0.0
    %951 = vmatmul.mubr.f32.gmra.mrb[0].mxu0 %v884
    %v952 = vpop.f32.mrb[0].mxu0
    %v953 = vadd.f32 0.0, %v952
    %v954 = vpop.f32.mrb[0].mxu0
    %955 = vdwg.mxu0
    %v956 = vlaneseq
    %v957 = vshrl.u32 %v956, 7
    %v958 = vsub.s32 0, %v957
    %v959 = vrot.slane %v953, %v958
    %v960 = vmul.f32 %v772, %v959
    %v961 = vlaneseq
    %v962 = vshrl.u32 %v961, 7
    %v963 = vsub.s32 1, %v962
    %v964 = vrot.slane %v953, %v963
    %v965 = vadd.f32 %v960, %v964
    %v966 = vmax.f32 %v965, 0.0
    %v967 = vadd.f32 %v966, %v377
    %v968 = vld [vmem:[#allocation4 + $0x198] sm:$0xff]
    %v969 = vld [vmem:[#allocation4 + $0x1a0] sm:$0xff]
    %v970 = vld [vmem:[#allocation4 + $0x1a8] sm:$0xff]
    %v971 = vld [vmem:[#allocation4 + $0x1b0] sm:$0xff]
    %v972 = vld [vmem:[#allocation4 + $0x1b8] sm:$0xff]
    %v973 = vld [vmem:[#allocation4 + $0x1c0] sm:$0xff]
    %v974 = vld [vmem:[#allocation4 + $0x1c8] sm:$0xff]
    %v975 = vld [vmem:[#allocation4 + $0x1d0] sm:$0xff]
    %v976 = vld [vmem:[#allocation6 + $0x90] ss:$0 sm:$0xff]
    %v977 = vld [vmem:[#allocation4 + $0x1d8] sm:$0xff]
    %v978 = vld [vmem:[#allocation4 + $0x1e0] sm:$0xff]
    %v980 = vsel %vm215, %v967, 0
    %982 = vmatprep.subr.mxu0 0.0
    %983 = vmatpush1.msra.mxu0 %v968
    %984 = vmatprep.subr.mxu0 0.0
    %985 = vmatpush1.msra.mxu0 %v969
    %986 = vmatprep.subr.mxu0 0.0
    %987 = vmatpush1.msra.mxu0 %v970
    %988 = vmatprep.subr.mxu0 0.0
    %989 = vmatpush1.msra.mxu0 %v971
    %990 = vmatprep.subr.mxu0 0.0
    %991 = vmatpush1.msra.mxu0 0.0
    %992 = vmatprep.subr.mxu0 0.0
    %993 = vmatpush1.msra.mxu0 0.0
    %994 = vmatprep.subr.mxu0 0.0
    %995 = vmatpush1.msra.mxu0 0.0
    %996 = vmatprep.subr.mxu0 0.0
    %997 = vmatpush1.msra.mxu0 0.0
    %998 = vmatprep.subr.mxu0 0.0
    %999 = vmatpush1.msra.mxu0 0.0
    %1000 = vmatprep.subr.mxu0 0.0
    %1001 = vmatpush1.msra.mxu0 0.0
    %1002 = vmatprep.subr.mxu0 0.0
    %1003 = vmatpush1.msra.mxu0 0.0
    %1004 = vmatprep.subr.mxu0 0.0
    %1005 = vmatpush1.msra.mxu0 0.0
    %1006 = vmatprep.subr.mxu0 0.0
    %1007 = vmatpush1.msra.mxu0 0.0
    %1008 = vmatprep.subr.mxu0 0.0
    %1009 = vmatpush1.msra.mxu0 0.0
    %1010 = vmatprep.subr.mxu0 0.0
    %1011 = vmatpush1.msra.mxu0 0.0
    %1012 = vmatprep.subr.mxu0 0.0
    %1013 = vmatpush1.msra.mxu0 0.0
    %1014 = vmatprep.subr.mxu0 0.0
    %1015 = vmatpush1.msra.mxu0 0.0
    %1016 = vmatprep.subr.mxu0 0.0
    %1017 = vmatpush1.msra.mxu0 0.0
    %1018 = vmatprep.subr.mxu0 0.0
    %1019 = vmatpush1.msra.mxu0 0.0
    %1020 = vmatprep.subr.mxu0 0.0
    %1021 = vmatpush1.msra.mxu0 0.0
    %1022 = vmatprep.subr.mxu0 0.0
    %1023 = vmatpush1.msra.mxu0 0.0
    %1024 = vmatprep.subr.mxu0 0.0
    %1025 = vmatpush1.msra.mxu0 0.0
    %1026 = vmatprep.subr.mxu0 0.0
    %1027 = vmatpush1.msra.mxu0 0.0
    %1028 = vmatprep.subr.mxu0 0.0
    %1029 = vmatpush1.msra.mxu0 0.0
    %1030 = vmatprep.subr.mxu0 0.0
    %1031 = vmatpush1.msra.mxu0 0.0
    %1032 = vmatprep.subr.mxu0 0.0
    %1033 = vmatpush1.msra.mxu0 0.0
    %1034 = vmatprep.subr.mxu0 0.0
    %1035 = vmatpush1.msra.mxu0 0.0
    %1036 = vmatprep.subr.mxu0 0.0
    %1037 = vmatpush1.msra.mxu0 0.0
    %1038 = vmatprep.subr.mxu0 0.0
    %1039 = vmatpush1.msra.mxu0 0.0
    %1040 = vmatprep.subr.mxu0 0.0
    %1041 = vmatpush1.msra.mxu0 0.0
    %1042 = vmatprep.subr.mxu0 0.0
    %1043 = vmatpush1.msra.mxu0 0.0
    %1044 = vmatprep.subr.mxu0 0.0
    %1045 = vmatpush1.msra.mxu0 0.0
    %1046 = vmatprep.mubr.f32.mxu0 0.0
    %1047 = vmatmul.mubr.f32.gmra.mrb[0].mxu0 %v980
    %v1048 = vpop.f32.mrb[0].mxu0
    %v1049 = vadd.f32 0.0, %v1048
    %v1050 = vpop.f32.mrb[0].mxu0
    %1051 = vdwg.mxu0
    %1052 = vmatprep.subr.mxu0 0.0
    %1053 = vmatpush1.msra.mxu0 %v972
    %1054 = vmatprep.subr.mxu0 0.0
    %1055 = vmatpush1.msra.mxu0 %v973
    %1056 = vmatprep.subr.mxu0 0.0
    %1057 = vmatpush1.msra.mxu0 %v974
    %1058 = vmatprep.subr.mxu0 0.0
    %1059 = vmatpush1.msra.mxu0 %v975
    %1060 = vmatprep.subr.mxu0 0.0
    %1061 = vmatpush1.msra.mxu0 0.0
    %1062 = vmatprep.subr.mxu0 0.0
    %1063 = vmatpush1.msra.mxu0 0.0
    %1064 = vmatprep.subr.mxu0 0.0
    %1065 = vmatpush1.msra.mxu0 0.0
    %1066 = vmatprep.subr.mxu0 0.0
    %1067 = vmatpush1.msra.mxu0 0.0
    %1068 = vmatprep.subr.mxu0 0.0
    %1069 = vmatpush1.msra.mxu0 0.0
    %1070 = vmatprep.subr.mxu0 0.0
    %1071 = vmatpush1.msra.mxu0 0.0
    %1072 = vmatprep.subr.mxu0 0.0
    %1073 = vmatpush1.msra.mxu0 0.0
    %1074 = vmatprep.subr.mxu0 0.0
    %1075 = vmatpush1.msra.mxu0 0.0
    %1076 = vmatprep.subr.mxu0 0.0
    %1077 = vmatpush1.msra.mxu0 0.0
    %1078 = vmatprep.subr.mxu0 0.0
    %1079 = vmatpush1.msra.mxu0 0.0
    %1080 = vmatprep.subr.mxu0 0.0
    %1081 = vmatpush1.msra.mxu0 0.0
    %1082 = vmatprep.subr.mxu0 0.0
    %1083 = vmatpush1.msra.mxu0 0.0
    %1084 = vmatprep.subr.mxu0 0.0
    %1085 = vmatpush1.msra.mxu0 0.0
    %1086 = vmatprep.subr.mxu0 0.0
    %1087 = vmatpush1.msra.mxu0 0.0
    %1088 = vmatprep.subr.mxu0 0.0
    %1089 = vmatpush1.msra.mxu0 0.0
    %1090 = vmatprep.subr.mxu0 0.0
    %1091 = vmatpush1.msra.mxu0 0.0
    %1092 = vmatprep.subr.mxu0 0.0
    %1093 = vmatpush1.msra.mxu0 0.0
    %1094 = vmatprep.subr.mxu0 0.0
    %1095 = vmatpush1.msra.mxu0 0.0
    %1096 = vmatprep.subr.mxu0 0.0
    %1097 = vmatpush1.msra.mxu0 0.0
    %1098 = vmatprep.subr.mxu0 0.0
    %1099 = vmatpush1.msra.mxu0 0.0
    %1100 = vmatprep.subr.mxu0 0.0
    %1101 = vmatpush1.msra.mxu0 0.0
    %1102 = vmatprep.subr.mxu0 0.0
    %1103 = vmatpush1.msra.mxu0 0.0
    %1104 = vmatprep.subr.mxu0 0.0
    %1105 = vmatpush1.msra.mxu0 0.0
    %1106 = vmatprep.subr.mxu0 0.0
    %1107 = vmatpush1.msra.mxu0 0.0
    %1108 = vmatprep.subr.mxu0 0.0
    %1109 = vmatpush1.msra.mxu0 0.0
    %1110 = vmatprep.subr.mxu0 0.0
    %1111 = vmatpush1.msra.mxu0 0.0
    %1112 = vmatprep.subr.mxu0 0.0
    %1113 = vmatpush1.msra.mxu0 0.0
    %1114 = vmatprep.subr.mxu0 0.0
    %1115 = vmatpush1.msra.mxu0 0.0
    %1116 = vmatprep.mubr.f32.mxu0 0.0
    %1117 = vmatmul.mubr.f32.gmra.mrb[0].mxu0 %v980
    %v1118 = vpop.f32.mrb[0].mxu0
    %v1119 = vadd.f32 0.0, %v1118
    %v1120 = vpop.f32.mrb[0].mxu0
    %1121 = vdwg.mxu0
    %vm1122 = vcmask 130048
    %v1124 = vsel %vm1122, %v977, 0
    %v1127 = vsel %vm1122, %v978, 0
    %1129 = vmatprep.subr.mxu0 0.0
    %1130 = vmatpush1.msra.mxu0 %v1049
    %1131 = vmatprep.subr.mxu0 0.0
    %1132 = vmatpush1.msra.mxu0 %v1119
    %1133 = vmatprep.subr.mxu0 0.0
    %1134 = vmatpush1.msra.mxu0 0.0
    %1135 = vmatprep.subr.mxu0 0.0
    %1136 = vmatpush1.msra.mxu0 0.0
    %1137 = vmatprep.subr.mxu0 0.0
    %1138 = vmatpush1.msra.mxu0 0.0
    %1139 = vmatprep.subr.mxu0 0.0
    %1140 = vmatpush1.msra.mxu0 0.0
    %1141 = vmatprep.subr.mxu0 0.0
    %1142 = vmatpush1.msra.mxu0 0.0
    %1143 = vmatprep.subr.mxu0 0.0
    %1144 = vmatpush1.msra.mxu0 0.0
    %1145 = vmatprep.subr.mxu0 0.0
    %1146 = vmatpush1.msra.mxu0 0.0
    %1147 = vmatprep.subr.mxu0 0.0
    %1148 = vmatpush1.msra.mxu0 0.0
    %1149 = vmatprep.subr.mxu0 0.0
    %1150 = vmatpush1.msra.mxu0 0.0
    %1151 = vmatprep.subr.mxu0 0.0
    %1152 = vmatpush1.msra.mxu0 0.0
    %1153 = vmatprep.subr.mxu0 0.0
    %1154 = vmatpush1.msra.mxu0 0.0
    %1155 = vmatprep.subr.mxu0 0.0
    %1156 = vmatpush1.msra.mxu0 0.0
    %1157 = vmatprep.subr.mxu0 0.0
    %1158 = vmatpush1.msra.mxu0 0.0
    %1159 = vmatprep.subr.mxu0 0.0
    %1160 = vmatpush1.msra.mxu0 0.0
    %1161 = vmatprep.subr.mxu0 0.0
    %1162 = vmatpush1.msra.mxu0 0.0
    %1163 = vmatprep.subr.mxu0 0.0
    %1164 = vmatpush1.msra.mxu0 0.0
    %1165 = vmatprep.subr.mxu0 0.0
    %1166 = vmatpush1.msra.mxu0 0.0
    %1167 = vmatprep.subr.mxu0 0.0
    %1168 = vmatpush1.msra.mxu0 0.0
    %1169 = vmatprep.subr.mxu0 0.0
    %1170 = vmatpush1.msra.mxu0 0.0
    %1171 = vmatprep.subr.mxu0 0.0
    %1172 = vmatpush1.msra.mxu0 0.0
    %1173 = vmatprep.subr.mxu0 0.0
    %1174 = vmatpush1.msra.mxu0 0.0
    %1175 = vmatprep.subr.mxu0 0.0
    %1176 = vmatpush1.msra.mxu0 0.0
    %1177 = vmatprep.subr.mxu0 0.0
    %1178 = vmatpush1.msra.mxu0 0.0
    %1179 = vmatprep.subr.mxu0 0.0
    %1180 = vmatpush1.msra.mxu0 0.0
    %1181 = vmatprep.subr.mxu0 0.0
    %1182 = vmatpush1.msra.mxu0 0.0
    %1183 = vmatprep.subr.mxu0 0.0
    %1184 = vmatpush1.msra.mxu0 0.0
    %1185 = vmatprep.subr.mxu0 0.0
    %1186 = vmatpush1.msra.mxu0 0.0
    %1187 = vmatprep.subr.mxu0 0.0
    %1188 = vmatpush1.msra.mxu0 0.0
    %1189 = vmatprep.subr.mxu0 0.0
    %1190 = vmatpush1.msra.mxu0 0.0
    %1191 = vmatprep.subr.mxu0 0.0
    %1192 = vmatpush1.msra.mxu0 0.0
    %1193 = vmatprep.mubr.f32.mxu0 0.0
    %1194 = vmatmul.mubr.f32.gmra.mrb[0].mxu0 %v1124
    %v1195 = vpop.f32.mrb[0].mxu0
    %v1196 = vadd.f32 %v976, %v1195
    %v1197 = vpop.f32.mrb[0].mxu0
    %1198 = vmatprep.mubr.f32.mxu0 0.0
    %1199 = vmatmul.mubr.f32.gmra.mrb[0].mxu0 %v1127
    %v1200 = vpop.f32.mrb[0].mxu0
    %v1201 = vadd.f32 %v976, %v1200
    %v1202 = vpop.f32.mrb[0].mxu0
    %1203 = vdwg.mxu0
    %v1204 = vmax.f32 %v1196, 0.0
    %v1205 = vmax.f32 %v1201, 0.0
    %v1206 = vld [vmem:[#allocation6 + $0xd8] sm:$0xff]
    %v1207 = vld [vmem:[#allocation6 + $0xe0] sm:$0xff]
    %v1208 = vld [vmem:[#allocation6 + $0xf0] sm:$0xff]
    %v1209 = vld [vmem:[#allocation6 + $0xf8] sm:$0xff]
    %v1210 = vld [vmem:[#allocation4 + $0x368] sm:$0xff]
    %v1211 = vld [vmem:[#allocation4 + $0x370] sm:$0xff]
    %v1212 = vld [vmem:[#allocation4 + $0x378] sm:$0xff]
    %v1213 = vld [vmem:[#allocation4 + $0x380] sm:$0xff]
    %v1214 = vld [vmem:[#allocation4 + $0x388] sm:$0xff]
    %v1215 = vld [vmem:[#allocation4 + $0x390] sm:$0xff]
    %v1216 = vld [vmem:[#allocation4 + $0x398] sm:$0xff]
    %v1217 = vld [vmem:[#allocation4 + $0x3a0] sm:$0xff]
    %v1218 = vld [vmem:[#allocation4 + $0x3a8] sm:$0xff]
    %v1219 = vld [vmem:[#allocation4 + $0x1e8] sm:$0xff]
    %v1220 = vld [vmem:[#allocation4 + $0x1f0] sm:$0xff]
    %v1221 = vld [vmem:[#allocation4 + $0x1f8] sm:$0xff]
    %v1222 = vld [vmem:[#allocation4 + $0x200] sm:$0xff]
    %v1223 = vld [vmem:[#allocation4 + $0x208] sm:$0xff]
    %v1224 = vld [vmem:[#allocation4 + $0x210] sm:$0xff]
    %v1225 = vld [vmem:[#allocation4 + $0x218] sm:$0xff]
    %v1226 = vld [vmem:[#allocation4 + $0x220] sm:$0xff]
    %v1227 = vld [vmem:[#allocation4 + $0x228] sm:$0xff]
    %v1228 = vld [vmem:[#allocation4 + $0x230] sm:$0xff]
    %v1229 = vld [vmem:[#allocation4 + $0x238] sm:$0xff]
    %v1230 = vld [vmem:[#allocation4 + $0x240] sm:$0xff]
    %v1231 = vld [vmem:[#allocation4 + $0x248] sm:$0xff]
    %v1232 = vld [vmem:[#allocation4 + $0x250] sm:$0xff]
    %v1233 = vld [vmem:[#allocation4 + $0x258] sm:$0xff]
    %v1234 = vld [vmem:[#allocation4 + $0x260] sm:$0xff]
    %v1235 = vld [vmem:[#allocation4 + $0x268] sm:$0xff]
    %v1236 = vld [vmem:[#allocation4 + $0x270] sm:$0xff]
    %v1237 = vld [vmem:[#allocation4 + $0x278] sm:$0xff]
    %v1238 = vld [vmem:[#allocation4 + $0x280] sm:$0xff]
    %v1239 = vld [vmem:[#allocation4 + $0x288] sm:$0xff]
    %v1240 = vld [vmem:[#allocation4 + $0x290] sm:$0xff]
    %v1241 = vld [vmem:[#allocation4 + $0x298] sm:$0xff]
    %v1242 = vld [vmem:[#allocation4 + $0x2a0] sm:$0xff]
    %v1243 = vrot.slane %v1204, 7
    %v1244 = vrot.slane %v1205, 7
    %v1245 = vlaneseq
    %v1246 = vshrl.u32 %v1245, 7
    %vm1247 = vcmp.lt.s32.totalorder %v1246, 1
    %v1248 = vsel %vm1247, %v1243, %v1244
    %v1249 = vsel %vm1247, %v1244, %v1243
    %v1250 = vrot.slane %v1204, 1
    %v1251 = vrot.slane %v1205, 1
    %vm1252 = vcmp.lt.s32.totalorder %v1246, 7
    %v1253 = vsel %vm1252, %v1250, %v1251
    %v1254 = vsel %vm1252, %v1251, %v1250
    %1257 = vrot.lane.b32.xlu0 %v1204, 64
    %v1258 = vpop.permute.xlu0 %1257
    %1259 = vrot.lane.b32.xlu0 %v1205, 64
    %v1260 = vpop.permute.xlu0 %1259
    %v1263 = vsel %vm407, %v1249, %v1258
    %v1264 = vsel %vm407, %v1248, %v1260
    %v1265 = vmul.f32 %v1263, %v1206
    %v1266 = vmul.f32 %v1253, %v1207
    %v1267 = vmul.f32 %v1264, %v1208
    %v1268 = vmul.f32 %v1254, %v1209
    %v1270 = vsel %vm407, %v1266, 0
    %v1273 = vsel %vm407, %v1268, 0
    %1275 = vmatprep.subr.mxu0 0.0
    %1276 = vmatpush1.msra.mxu0 %v1219
    %1277 = vmatprep.subr.mxu0 0.0
    %1278 = vmatpush1.msra.mxu0 %v1220
    %1279 = vmatprep.subr.mxu0 0.0
    %1280 = vmatpush1.msra.mxu0 %v1221
    %1281 = vmatprep.subr.mxu0 0.0
    %1282 = vmatpush1.msra.mxu0 %v1222
    %1283 = vmatprep.subr.mxu0 0.0
    %1284 = vmatpush1.msra.mxu0 %v1223
    %1285 = vmatprep.subr.mxu0 0.0
    %1286 = vmatpush1.msra.mxu0 %v1224
    %1287 = vmatprep.subr.mxu0 0.0
    %1288 = vmatpush1.msra.mxu0 %v1225
    %1289 = vmatprep.subr.mxu0 0.0
    %1290 = vmatpush1.msra.mxu0 %v1226
    %1291 = vmatprep.subr.mxu0 0.0
    %1292 = vmatpush1.msra.mxu0 %v1227
    %1293 = vmatprep.subr.mxu0 0.0
    %1294 = vmatpush1.msra.mxu0 %v1228
    %1295 = vmatprep.subr.mxu0 0.0
    %1296 = vmatpush1.msra.mxu0 %v1229
    %1297 = vmatprep.subr.mxu0 0.0
    %1298 = vmatpush1.msra.mxu0 %v1230
    %1299 = vmatprep.subr.mxu0 0.0
    %1300 = vmatpush1.msra.mxu0 %v1231
    %1301 = vmatprep.subr.mxu0 0.0
    %1302 = vmatpush1.msra.mxu0 %v1232
    %1303 = vmatprep.subr.mxu0 0.0
    %1304 = vmatpush1.msra.mxu0 %v1233
    %1305 = vmatprep.subr.mxu0 0.0
    %1306 = vmatpush1.msra.mxu0 %v1234
    %1307 = vmatprep.subr.mxu0 0.0
    %1308 = vmatpush1.msra.mxu0 %v1235
    %1309 = vmatprep.subr.mxu0 0.0
    %1310 = vmatpush1.msra.mxu0 %v1236
    %1311 = vmatprep.subr.mxu0 0.0
    %1312 = vmatpush1.msra.mxu0 %v1237
    %1313 = vmatprep.subr.mxu0 0.0
    %1314 = vmatpush1.msra.mxu0 %v1238
    %1315 = vmatprep.subr.mxu0 0.0
    %1316 = vmatpush1.msra.mxu0 %v1239
    %1317 = vmatprep.subr.mxu0 0.0
    %1318 = vmatpush1.msra.mxu0 %v1240
    %1319 = vmatprep.subr.mxu0 0.0
    %1320 = vmatpush1.msra.mxu0 %v1241
    %1321 = vmatprep.subr.mxu0 0.0
    %1322 = vmatpush1.msra.mxu0 %v1242
    %1323 = vmatprep.subr.mxu0 0.0
    %1324 = vmatpush1.msra.mxu0 0.0
    %1325 = vmatprep.subr.mxu0 0.0
    %1326 = vmatpush1.msra.mxu0 0.0
    %1327 = vmatprep.subr.mxu0 0.0
    %1328 = vmatpush1.msra.mxu0 0.0
    %1329 = vmatprep.subr.mxu0 0.0
    %1330 = vmatpush1.msra.mxu0 0.0
    %1331 = vmatprep.subr.mxu0 0.0
    %1332 = vmatpush1.msra.mxu0 0.0
    %1333 = vmatprep.subr.mxu0 0.0
    %1334 = vmatpush1.msra.mxu0 0.0
    %1335 = vmatprep.subr.mxu0 0.0
    %1336 = vmatpush1.msra.mxu0 0.0
    %1337 = vmatprep.subr.mxu0 0.0
    %1338 = vmatpush1.msra.mxu0 0.0
    %1339 = vmatprep.mubr.f32.mxu0 %v1270
    %1340 = vmatmul.mubr.f32.gmra.mrb[0].mxu0 %v1265
    %v1341 = vpop.f32.mrb[0].mxu0
    %v1342 = vadd.f32 0.0, %v1341
    %v1343 = vpop.f32.mrb[0].mxu0
    %1344 = vmatprep.mubr.f32.mxu0 %v1273
    %1345 = vmatmul.mubr.f32.gmra.mrb[0].mxu0 %v1267
    %v1346 = vpop.f32.mrb[0].mxu0
    %v1347 = vadd.f32 0.0, %v1346
    %v1348 = vpop.f32.mrb[0].mxu0
    %1349 = vdwg.mxu0
    %v1350 = vld [vmem:[#allocation6 + $0xa8] sm:$0x3]
    %v1351 = vsel %vm407, %v1342, 0.0
    %v1352 = vsel %vm407, %v1347, 0.0
    %v1353 = vadd.f32 %v1351, %v1352
    %v1354 = vrot.slane %v1353, 4
    %v1355 = vadd.f32 %v1353, %v1354
    %v1356 = vrot.slane %v1355, 2
    %v1357 = vadd.f32 %v1355, %v1356
    %v1358 = vrot.slane %v1357, 1
    %v1359 = vadd.f32 %v1357, %v1358
    %v1360 = vmul.f32 %v1342, %v1342
    %v1361 = vmul.f32 %v1347, %v1347
    %v1362 = vsel %vm407, %v1360, 0.0
    %v1363 = vsel %vm407, %v1361, 0.0
    %v1364 = vadd.f32 %v1362, %v1363
    %v1365 = vrot.slane %v1364, 4
    %v1366 = vadd.f32 %v1364, %v1365
    %v1367 = vrot.slane %v1366, 2
    %v1368 = vadd.f32 %v1366, %v1367
    %v1369 = vrot.slane %v1368, 1
    %v1370 = vadd.f32 %v1368, %v1369
    %v1371 = vsel %vm500, %v1359, %v1370
    %v1373 = vsel %vm407, %v1371, 0
    %1375 = vmatprep.subr.mxu0 0.0
    %1376 = vmatpush1.msra.mxu0 %v1210
    %1377 = vmatprep.subr.mxu0 0.0
    %1378 = vmatpush1.msra.mxu0 %v1211
    %1379 = vmatprep.subr.mxu0 0.0
    %1380 = vmatpush1.msra.mxu0 %v1212
    %1381 = vmatprep.subr.mxu0 0.0
    %1382 = vmatpush1.msra.mxu0 %v1213
    %1383 = vmatprep.subr.mxu0 0.0
    %1384 = vmatpush1.msra.mxu0 %v1214
    %1385 = vmatprep.subr.mxu0 0.0
    %1386 = vmatpush1.msra.mxu0 %v1215
    %1387 = vmatprep.subr.mxu0 0.0
    %1388 = vmatpush1.msra.mxu0 %v1216
    %1389 = vmatprep.subr.mxu0 0.0
    %1390 = vmatpush1.msra.mxu0 %v1217
    %1391 = vmatprep.subr.mxu0 0.0
    %1392 = vmatpush1.msra.mxu0 0.0
    %1393 = vmatprep.subr.mxu0 0.0
    %1394 = vmatpush1.msra.mxu0 0.0
    %1395 = vmatprep.subr.mxu0 0.0
    %1396 = vmatpush1.msra.mxu0 0.0
    %1397 = vmatprep.subr.mxu0 0.0
    %1398 = vmatpush1.msra.mxu0 0.0
    %1399 = vmatprep.subr.mxu0 0.0
    %1400 = vmatpush1.msra.mxu0 0.0
    %1401 = vmatprep.subr.mxu0 0.0
    %1402 = vmatpush1.msra.mxu0 0.0
    %1403 = vmatprep.subr.mxu0 0.0
    %1404 = vmatpush1.msra.mxu0 0.0
    %1405 = vmatprep.subr.mxu0 0.0
    %1406 = vmatpush1.msra.mxu0 0.0
    %1407 = vmatprep.subr.mxu0 0.0
    %1408 = vmatpush1.msra.mxu0 0.0
    %1409 = vmatprep.subr.mxu0 0.0
    %1410 = vmatpush1.msra.mxu0 0.0
    %1411 = vmatprep.subr.mxu0 0.0
    %1412 = vmatpush1.msra.mxu0 0.0
    %1413 = vmatprep.subr.mxu0 0.0
    %1414 = vmatpush1.msra.mxu0 0.0
    %1415 = vmatprep.subr.mxu0 0.0
    %1416 = vmatpush1.msra.mxu0 0.0
    %1417 = vmatprep.subr.mxu0 0.0
    %1418 = vmatpush1.msra.mxu0 0.0
    %1419 = vmatprep.subr.mxu0 0.0
    %1420 = vmatpush1.msra.mxu0 0.0
    %1421 = vmatprep.subr.mxu0 0.0
    %1422 = vmatpush1.msra.mxu0 0.0
    %1423 = vmatprep.subr.mxu0 0.0
    %1424 = vmatpush1.msra.mxu0 0.0
    %1425 = vmatprep.subr.mxu0 0.0
    %1426 = vmatpush1.msra.mxu0 0.0
    %1427 = vmatprep.subr.mxu0 0.0
    %1428 = vmatpush1.msra.mxu0 0.0
    %1429 = vmatprep.subr.mxu0 0.0
    %1430 = vmatpush1.msra.mxu0 0.0
    %1431 = vmatprep.subr.mxu0 0.0
    %1432 = vmatpush1.msra.mxu0 0.0
    %1433 = vmatprep.subr.mxu0 0.0
    %1434 = vmatpush1.msra.mxu0 0.0
    %1435 = vmatprep.subr.mxu0 0.0
    %1436 = vmatpush1.msra.mxu0 0.0
    %1437 = vmatprep.subr.mxu0 0.0
    %1438 = vmatpush1.msra.mxu0 0.0
    %1439 = vmatprep.mubr.f32.mxu0 0.0
    %1440 = vmatmul.mubr.f32.gmra.mrb[0].mxu0 %v1373
    %v1441 = vpop.f32.mrb[0].mxu0
    %v1442 = vadd.f32 0.0, %v1441
    %v1443 = vpop.f32.mrb[0].mxu0
    %1444 = vdwg.mxu0
    %v1445 = vmul.f32 %v1442, 0.0078125
    %v1446 = vmul.f32 %v1445, %v1445
    %v1448 = vrot.slane %v1446, 7
    %v1450 = vsub.f32 %v1445, %v1448
    %v1451 = vadd.f32 %v1450, 1e-05
    %v1452 = vrsqrt.pop %v1451
    %v1454 = vrot.slane %v1452, 1
    %v1456 = vmul.f32 %v1350, %v1454
    %v1457 = vmul.f32 %v1445, %v1456
    %v1459 = vrot.slane %v1457, 7
    %v1461 = vsub.f32 %v1350, %v1459
    %v1462 = vsel %vm500, %v1456, %v1461
    %v1464 = vsel %vm56, %v1462, 0
    %1466 = vmatprep.subr.mxu0 0.0
    %1467 = vmatpush1.msra.mxu0 %v1218
    %1468 = vmatprep.subr.mxu0 0.0
    %1469 = vmatpush1.msra.mxu0 0.0
    %1470 = vmatprep.subr.mxu0 0.0
    %1471 = vmatpush1.msra.mxu0 0.0
    %1472 = vmatprep.subr.mxu0 0.0
    %1473 = vmatpush1.msra.mxu0 0.0
    %1474 = vmatprep.subr.mxu0 0.0
    %1475 = vmatpush1.msra.mxu0 0.0
    %1476 = vmatprep.subr.mxu0 0.0
    %1477 = vmatpush1.msra.mxu0 0.0
    %1478 = vmatprep.subr.mxu0 0.0
    %1479 = vmatpush1.msra.mxu0 0.0
    %1480 = vmatprep.subr.mxu0 0.0
    %1481 = vmatpush1.msra.mxu0 0.0
    %1482 = vmatprep.subr.mxu0 0.0
    %1483 = vmatpush1.msra.mxu0 0.0
    %1484 = vmatprep.subr.mxu0 0.0
    %1485 = vmatpush1.msra.mxu0 0.0
    %1486 = vmatprep.subr.mxu0 0.0
    %1487 = vmatpush1.msra.mxu0 0.0
    %1488 = vmatprep.subr.mxu0 0.0
    %1489 = vmatpush1.msra.mxu0 0.0
    %1490 = vmatprep.subr.mxu0 0.0
    %1491 = vmatpush1.msra.mxu0 0.0
    %1492 = vmatprep.subr.mxu0 0.0
    %1493 = vmatpush1.msra.mxu0 0.0
    %1494 = vmatprep.subr.mxu0 0.0
    %1495 = vmatpush1.msra.mxu0 0.0
    %1496 = vmatprep.subr.mxu0 0.0
    %1497 = vmatpush1.msra.mxu0 0.0
    %1498 = vmatprep.subr.mxu0 0.0
    %1499 = vmatpush1.msra.mxu0 0.0
    %1500 = vmatprep.subr.mxu0 0.0
    %1501 = vmatpush1.msra.mxu0 0.0
    %1502 = vmatprep.subr.mxu0 0.0
    %1503 = vmatpush1.msra.mxu0 0.0
    %1504 = vmatprep.subr.mxu0 0.0
    %1505 = vmatpush1.msra.mxu0 0.0
    %1506 = vmatprep.subr.mxu0 0.0
    %1507 = vmatpush1.msra.mxu0 0.0
    %1508 = vmatprep.subr.mxu0 0.0
    %1509 = vmatpush1.msra.mxu0 0.0
    %1510 = vmatprep.subr.mxu0 0.0
    %1511 = vmatpush1.msra.mxu0 0.0
    %1512 = vmatprep.subr.mxu0 0.0
    %1513 = vmatpush1.msra.mxu0 0.0
    %1514 = vmatprep.subr.mxu0 0.0
    %1515 = vmatpush1.msra.mxu0 0.0
    %1516 = vmatprep.subr.mxu0 0.0
    %1517 = vmatpush1.msra.mxu0 0.0
    %1518 = vmatprep.subr.mxu0 0.0
    %1519 = vmatpush1.msra.mxu0 0.0
    %1520 = vmatprep.subr.mxu0 0.0
    %1521 = vmatpush1.msra.mxu0 0.0
    %1522 = vmatprep.subr.mxu0 0.0
    %1523 = vmatpush1.msra.mxu0 0.0
    %1524 = vmatprep.subr.mxu0 0.0
    %1525 = vmatpush1.msra.mxu0 0.0
    %1526 = vmatprep.subr.mxu0 0.0
    %1527 = vmatpush1.msra.mxu0 0.0
    %1528 = vmatprep.subr.mxu0 0.0
    %1529 = vmatpush1.msra.mxu0 0.0
    %1530 = vmatprep.mubr.f32.mxu0 0.0
    %1531 = vmatmul.mubr.f32.gmra.mrb[0].mxu0 %v1464
    %v1532 = vpop.f32.mrb[0].mxu0
    %v1533 = vadd.f32 0.0, %v1532
    %v1534 = vpop.f32.mrb[0].mxu0
    %1535 = vdwg.mxu0
    %v1536 = vlaneseq
    %v1537 = vshrl.u32 %v1536, 7
    %v1538 = vsub.s32 0, %v1537
    %v1539 = vrot.slane %v1533, %v1538
    %v1540 = vmul.f32 %v1342, %v1539
    %v1541 = vmul.f32 %v1347, %v1539
    %v1542 = vlaneseq
    %v1543 = vshrl.u32 %v1542, 7
    %v1544 = vsub.s32 1, %v1543
    %v1545 = vrot.slane %v1533, %v1544
    %v1546 = vadd.f32 %v1540, %v1545
    %v1547 = vadd.f32 %v1541, %v1545
    %v1548 = vmax.f32 %v1546, 0.0
    %v1549 = vmax.f32 %v1547, 0.0
    %v1550 = vld [vmem:[#allocation4 + $0x2a8] sm:$0xff]
    %v1551 = vld [vmem:[#allocation4 + $0x2b0] sm:$0xff]
    %v1552 = vld [vmem:[#allocation4 + $0x2b8] sm:$0xff]
    %v1553 = vld [vmem:[#allocation4 + $0x2c0] sm:$0xff]
    %v1554 = vld [vmem:[#allocation4 + $0x2c8] sm:$0xff]
    %v1555 = vld [vmem:[#allocation4 + $0x2d0] sm:$0xff]
    %v1556 = vld [vmem:[#allocation4 + $0x2d8] sm:$0xff]
    %v1557 = vld [vmem:[#allocation4 + $0x2e0] sm:$0xff]
    %v1558 = vld [vmem:[#allocation4 + $0x2e8] sm:$0xff]
    %v1559 = vld [vmem:[#allocation4 + $0x2f0] sm:$0xff]
    %v1560 = vld [vmem:[#allocation4 + $0x2f8] sm:$0xff]
    %v1561 = vld [vmem:[#allocation4 + $0x300] sm:$0xff]
    %v1562 = vld [vmem:[#allocation4 + $0x308] sm:$0xff]
    %v1563 = vld [vmem:[#allocation4 + $0x310] sm:$0xff]
    %v1564 = vld [vmem:[#allocation4 + $0x318] sm:$0xff]
    %v1565 = vld [vmem:[#allocation4 + $0x320] sm:$0xff]
    %v1566 = vld [vmem:[#allocation4 + $0x328] sm:$0xff]
    %v1567 = vld [vmem:[#allocation4 + $0x330] sm:$0xff]
    %v1568 = vld [vmem:[#allocation4 + $0x338] sm:$0xff]
    %v1569 = vld [vmem:[#allocation4 + $0x340] sm:$0xff]
    %v1570 = vld [vmem:[#allocation4 + $0x348] sm:$0xff]
    %v1571 = vld [vmem:[#allocation4 + $0x350] sm:$0xff]
    %v1572 = vld [vmem:[#allocation4 + $0x358] sm:$0xff]
    %v1573 = vld [vmem:[#allocation4 + $0x360] sm:$0xff]
    %v1574 = vrot.slane %v1548, 7
    %v1575 = vrot.slane %v1549, 7
    %v1576 = vsel %vm1247, %v1574, %v1575
    %v1577 = vsel %vm1247, %v1575, %v1574
    %v1578 = vrot.slane %v1548, 1
    %v1579 = vrot.slane %v1549, 1
    %v1580 = vsel %vm1252, %v1578, %v1579
    %v1581 = vsel %vm1252, %v1579, %v1578
    %1584 = vrot.lane.b32.xlu0 %v1548, 64
    %v1585 = vpop.permute.xlu0 %1584
    %1586 = vrot.lane.b32.xlu0 %v1549, 64
    %v1587 = vpop.permute.xlu0 %1586
    %v1590 = vsel %vm407, %v1577, %v1585
    %v1591 = vsel %vm407, %v1576, %v1587
    %v1592 = vmul.f32 %v1590, %v1206
    %v1593 = vmul.f32 %v1580, %v1207
    %v1594 = vmul.f32 %v1591, %v1208
    %v1595 = vmul.f32 %v1581, %v1209
    %v1597 = vsel %vm407, %v1593, 0
    %v1600 = vsel %vm407, %v1595, 0
    %1602 = vmatprep.subr.mxu0 0.0
    %1603 = vmatpush1.msra.mxu0 %v1550
    %1604 = vmatprep.subr.mxu0 0.0
    %1605 = vmatpush1.msra.mxu0 %v1551
    %1606 = vmatprep.subr.mxu0 0.0
    %1607 = vmatpush1.msra.mxu0 %v1552
    %1608 = vmatprep.subr.mxu0 0.0
    %1609 = vmatpush1.msra.mxu0 %v1553
    %1610 = vmatprep.subr.mxu0 0.0
    %1611 = vmatpush1.msra.mxu0 %v1554
    %1612 = vmatprep.subr.mxu0 0.0
    %1613 = vmatpush1.msra.mxu0 %v1555
    %1614 = vmatprep.subr.mxu0 0.0
    %1615 = vmatpush1.msra.mxu0 %v1556
    %1616 = vmatprep.subr.mxu0 0.0
    %1617 = vmatpush1.msra.mxu0 %v1557
    %1618 = vmatprep.subr.mxu0 0.0
    %1619 = vmatpush1.msra.mxu0 %v1558
    %1620 = vmatprep.subr.mxu0 0.0
    %1621 = vmatpush1.msra.mxu0 %v1559
    %1622 = vmatprep.subr.mxu0 0.0
    %1623 = vmatpush1.msra.mxu0 %v1560
    %1624 = vmatprep.subr.mxu0 0.0
    %1625 = vmatpush1.msra.mxu0 %v1561
    %1626 = vmatprep.subr.mxu0 0.0
    %1627 = vmatpush1.msra.mxu0 %v1562
    %1628 = vmatprep.subr.mxu0 0.0
    %1629 = vmatpush1.msra.mxu0 %v1563
    %1630 = vmatprep.subr.mxu0 0.0
    %1631 = vmatpush1.msra.mxu0 %v1564
    %1632 = vmatprep.subr.mxu0 0.0
    %1633 = vmatpush1.msra.mxu0 %v1565
    %1634 = vmatprep.subr.mxu0 0.0
    %1635 = vmatpush1.msra.mxu0 %v1566
    %1636 = vmatprep.subr.mxu0 0.0
    %1637 = vmatpush1.msra.mxu0 %v1567
    %1638 = vmatprep.subr.mxu0 0.0
    %1639 = vmatpush1.msra.mxu0 %v1568
    %1640 = vmatprep.subr.mxu0 0.0
    %1641 = vmatpush1.msra.mxu0 %v1569
    %1642 = vmatprep.subr.mxu0 0.0
    %1643 = vmatpush1.msra.mxu0 %v1570
    %1644 = vmatprep.subr.mxu0 0.0
    %1645 = vmatpush1.msra.mxu0 %v1571
    %1646 = vmatprep.subr.mxu0 0.0
    %1647 = vmatpush1.msra.mxu0 %v1572
    %1648 = vmatprep.subr.mxu0 0.0
    %1649 = vmatpush1.msra.mxu0 %v1573
    %1650 = vmatprep.subr.mxu0 0.0
    %1651 = vmatpush1.msra.mxu0 0.0
    %1652 = vmatprep.subr.mxu0 0.0
    %1653 = vmatpush1.msra.mxu0 0.0
    %1654 = vmatprep.subr.mxu0 0.0
    %1655 = vmatpush1.msra.mxu0 0.0
    %1656 = vmatprep.subr.mxu0 0.0
    %1657 = vmatpush1.msra.mxu0 0.0
    %1658 = vmatprep.subr.mxu0 0.0
    %1659 = vmatpush1.msra.mxu0 0.0
    %1660 = vmatprep.subr.mxu0 0.0
    %1661 = vmatpush1.msra.mxu0 0.0
    %1662 = vmatprep.subr.mxu0 0.0
    %1663 = vmatpush1.msra.mxu0 0.0
    %1664 = vmatprep.subr.mxu0 0.0
    %1665 = vmatpush1.msra.mxu0 0.0
    %1666 = vmatprep.mubr.f32.mxu0 %v1597
    %1667 = vmatmul.mubr.f32.gmra.mrb[0].mxu0 %v1592
    %v1668 = vpop.f32.mrb[0].mxu0
    %v1669 = vadd.f32 0.0, %v1668
    %v1670 = vpop.f32.mrb[0].mxu0
    %1671 = vmatprep.mubr.f32.mxu0 %v1600
    %1672 = vmatmul.mubr.f32.gmra.mrb[0].mxu0 %v1594
    %v1673 = vpop.f32.mrb[0].mxu0
    %v1674 = vadd.f32 0.0, %v1673
    %v1675 = vpop.f32.mrb[0].mxu0
    %1676 = vdwg.mxu0
    %v1677 = vld [vmem:[#allocation6 + $0xc0] sm:$0x3]
    %v1678 = vsel %vm407, %v1669, 0.0
    %v1679 = vsel %vm407, %v1674, 0.0
    %v1680 = vadd.f32 %v1678, %v1679
    %v1681 = vrot.slane %v1680, 4
    %v1682 = vadd.f32 %v1680, %v1681
    %v1683 = vrot.slane %v1682, 2
    %v1684 = vadd.f32 %v1682, %v1683
    %v1685 = vrot.slane %v1684, 1
    %v1686 = vadd.f32 %v1684, %v1685
    %v1687 = vmul.f32 %v1669, %v1669
    %v1688 = vmul.f32 %v1674, %v1674
    %v1689 = vsel %vm407, %v1687, 0.0
    %v1690 = vsel %vm407, %v1688, 0.0
    %v1691 = vadd.f32 %v1689, %v1690
    %v1692 = vrot.slane %v1691, 4
    %v1693 = vadd.f32 %v1691, %v1692
    %v1694 = vrot.slane %v1693, 2
    %v1695 = vadd.f32 %v1693, %v1694
    %v1696 = vrot.slane %v1695, 1
    %v1697 = vadd.f32 %v1695, %v1696
    %v1698 = vsel %vm500, %v1686, %v1697
    %v1700 = vsel %vm407, %v1698, 0
    %1702 = vmatprep.subr.mxu0 0.0
    %1703 = vmatpush1.msra.mxu0 %v1210
    %1704 = vmatprep.subr.mxu0 0.0
    %1705 = vmatpush1.msra.mxu0 %v1211
    %1706 = vmatprep.subr.mxu0 0.0
    %1707 = vmatpush1.msra.mxu0 %v1212
    %1708 = vmatprep.subr.mxu0 0.0
    %1709 = vmatpush1.msra.mxu0 %v1213
    %1710 = vmatprep.subr.mxu0 0.0
    %1711 = vmatpush1.msra.mxu0 %v1214
    %1712 = vmatprep.subr.mxu0 0.0
    %1713 = vmatpush1.msra.mxu0 %v1215
    %1714 = vmatprep.subr.mxu0 0.0
    %1715 = vmatpush1.msra.mxu0 %v1216
    %1716 = vmatprep.subr.mxu0 0.0
    %1717 = vmatpush1.msra.mxu0 %v1217
    %1718 = vmatprep.subr.mxu0 0.0
    %1719 = vmatpush1.msra.mxu0 0.0
    %1720 = vmatprep.subr.mxu0 0.0
    %1721 = vmatpush1.msra.mxu0 0.0
    %1722 = vmatprep.subr.mxu0 0.0
    %1723 = vmatpush1.msra.mxu0 0.0
    %1724 = vmatprep.subr.mxu0 0.0
    %1725 = vmatpush1.msra.mxu0 0.0
    %1726 = vmatprep.subr.mxu0 0.0
    %1727 = vmatpush1.msra.mxu0 0.0
    %1728 = vmatprep.subr.mxu0 0.0
    %1729 = vmatpush1.msra.mxu0 0.0
    %1730 = vmatprep.subr.mxu0 0.0
    %1731 = vmatpush1.msra.mxu0 0.0
    %1732 = vmatprep.subr.mxu0 0.0
    %1733 = vmatpush1.msra.mxu0 0.0
    %1734 = vmatprep.subr.mxu0 0.0
    %1735 = vmatpush1.msra.mxu0 0.0
    %1736 = vmatprep.subr.mxu0 0.0
    %1737 = vmatpush1.msra.mxu0 0.0
    %1738 = vmatprep.subr.mxu0 0.0
    %1739 = vmatpush1.msra.mxu0 0.0
    %1740 = vmatprep.subr.mxu0 0.0
    %1741 = vmatpush1.msra.mxu0 0.0
    %1742 = vmatprep.subr.mxu0 0.0
    %1743 = vmatpush1.msra.mxu0 0.0
    %1744 = vmatprep.subr.mxu0 0.0
    %1745 = vmatpush1.msra.mxu0 0.0
    %1746 = vmatprep.subr.mxu0 0.0
    %1747 = vmatpush1.msra.mxu0 0.0
    %1748 = vmatprep.subr.mxu0 0.0
    %1749 = vmatpush1.msra.mxu0 0.0
    %1750 = vmatprep.subr.mxu0 0.0
    %1751 = vmatpush1.msra.mxu0 0.0
    %1752 = vmatprep.subr.mxu0 0.0
    %1753 = vmatpush1.msra.mxu0 0.0
    %1754 = vmatprep.subr.mxu0 0.0
    %1755 = vmatpush1.msra.mxu0 0.0
    %1756 = vmatprep.subr.mxu0 0.0
    %1757 = vmatpush1.msra.mxu0 0.0
    %1758 = vmatprep.subr.mxu0 0.0
    %1759 = vmatpush1.msra.mxu0 0.0
    %1760 = vmatprep.subr.mxu0 0.0
    %1761 = vmatpush1.msra.mxu0 0.0
    %1762 = vmatprep.subr.mxu0 0.0
    %1763 = vmatpush1.msra.mxu0 0.0
    %1764 = vmatprep.subr.mxu0 0.0
    %1765 = vmatpush1.msra.mxu0 0.0
    %1766 = vmatprep.mubr.f32.mxu0 0.0
    %1767 = vmatmul.mubr.f32.gmra.mrb[0].mxu0 %v1700
    %v1768 = vpop.f32.mrb[0].mxu0
    %v1769 = vadd.f32 0.0, %v1768
    %v1770 = vpop.f32.mrb[0].mxu0
    %1771 = vdwg.mxu0
    %v1772 = vmul.f32 %v1769, 0.0078125
    %v1773 = vmul.f32 %v1772, %v1772
    %v1775 = vrot.slane %v1773, 7
    %v1777 = vsub.f32 %v1772, %v1775
    %v1778 = vadd.f32 %v1777, 1e-05
    %v1779 = vrsqrt.pop %v1778
    %v1781 = vrot.slane %v1779, 1
    %v1783 = vmul.f32 %v1677, %v1781
    %v1784 = vmul.f32 %v1772, %v1783
    %v1786 = vrot.slane %v1784, 7
    %v1788 = vsub.f32 %v1677, %v1786
    %v1789 = vsel %vm500, %v1783, %v1788
    %v1791 = vsel %vm56, %v1789, 0
    %1793 = vmatprep.subr.mxu0 0.0
    %1794 = vmatpush1.msra.mxu0 %v1218
    %1795 = vmatprep.subr.mxu0 0.0
    %1796 = vmatpush1.msra.mxu0 0.0
    %1797 = vmatprep.subr.mxu0 0.0
    %1798 = vmatpush1.msra.mxu0 0.0
    %1799 = vmatprep.subr.mxu0 0.0
    %1800 = vmatpush1.msra.mxu0 0.0
    %1801 = vmatprep.subr.mxu0 0.0
    %1802 = vmatpush1.msra.mxu0 0.0
    %1803 = vmatprep.subr.mxu0 0.0
    %1804 = vmatpush1.msra.mxu0 0.0
    %1805 = vmatprep.subr.mxu0 0.0
    %1806 = vmatpush1.msra.mxu0 0.0
    %1807 = vmatprep.subr.mxu0 0.0
    %1808 = vmatpush1.msra.mxu0 0.0
    %1809 = vmatprep.subr.mxu0 0.0
    %1810 = vmatpush1.msra.mxu0 0.0
    %1811 = vmatprep.subr.mxu0 0.0
    %1812 = vmatpush1.msra.mxu0 0.0
    %1813 = vmatprep.subr.mxu0 0.0
    %1814 = vmatpush1.msra.mxu0 0.0
    %1815 = vmatprep.subr.mxu0 0.0
    %1816 = vmatpush1.msra.mxu0 0.0
    %1817 = vmatprep.subr.mxu0 0.0
    %1818 = vmatpush1.msra.mxu0 0.0
    %1819 = vmatprep.subr.mxu0 0.0
    %1820 = vmatpush1.msra.mxu0 0.0
    %1821 = vmatprep.subr.mxu0 0.0
    %1822 = vmatpush1.msra.mxu0 0.0
    %1823 = vmatprep.subr.mxu0 0.0
    %1824 = vmatpush1.msra.mxu0 0.0
    %1825 = vmatprep.subr.mxu0 0.0
    %1826 = vmatpush1.msra.mxu0 0.0
    %1827 = vmatprep.subr.mxu0 0.0
    %1828 = vmatpush1.msra.mxu0 0.0
    %1829 = vmatprep.subr.mxu0 0.0
    %1830 = vmatpush1.msra.mxu0 0.0
    %1831 = vmatprep.subr.mxu0 0.0
    %1832 = vmatpush1.msra.mxu0 0.0
    %1833 = vmatprep.subr.mxu0 0.0
    %1834 = vmatpush1.msra.mxu0 0.0
    %1835 = vmatprep.subr.mxu0 0.0
    %1836 = vmatpush1.msra.mxu0 0.0
    %1837 = vmatprep.subr.mxu0 0.0
    %1838 = vmatpush1.msra.mxu0 0.0
    %1839 = vmatprep.subr.mxu0 0.0
    %1840 = vmatpush1.msra.mxu0 0.0
    %1841 = vmatprep.subr.mxu0 0.0
    %1842 = vmatpush1.msra.mxu0 0.0
    %1843 = vmatprep.subr.mxu0 0.0
    %1844 = vmatpush1.msra.mxu0 0.0
    %1845 = vmatprep.subr.mxu0 0.0
    %1846 = vmatpush1.msra.mxu0 0.0
    %1847 = vmatprep.subr.mxu0 0.0
    %1848 = vmatpush1.msra.mxu0 0.0
    %1849 = vmatprep.subr.mxu0 0.0
    %1850 = vmatpush1.msra.mxu0 0.0
    %1851 = vmatprep.subr.mxu0 0.0
    %1852 = vmatpush1.msra.mxu0 0.0
    %1853 = vmatprep.subr.mxu0 0.0
    %1854 = vmatpush1.msra.mxu0 0.0
    %1855 = vmatprep.subr.mxu0 0.0
    %1856 = vmatpush1.msra.mxu0 0.0
    %1857 = vmatprep.mubr.f32.mxu0 0.0
    %1858 = vmatmul.mubr.f32.gmra.mrb[0].mxu0 %v1791
    %v1859 = vpop.f32.mrb[0].mxu0
    %v1860 = vadd.f32 0.0, %v1859
    %v1861 = vpop.f32.mrb[0].mxu0
    %1862 = vdwg.mxu0
    %v1863 = vlaneseq
    %v1864 = vshrl.u32 %v1863, 7
    %v1865 = vsub.s32 0, %v1864
    %v1866 = vrot.slane %v1860, %v1865
    %v1867 = vmul.f32 %v1669, %v1866
    %v1868 = vmul.f32 %v1674, %v1866
    %v1869 = vlaneseq
    %v1870 = vshrl.u32 %v1869, 7
    %v1871 = vsub.s32 1, %v1870
    %v1872 = vrot.slane %v1860, %v1871
    %v1873 = vadd.f32 %v1867, %v1872
    %v1874 = vadd.f32 %v1868, %v1872
    %v1875 = vmax.f32 %v1873, 0.0
    %v1876 = vmax.f32 %v1874, 0.0
    %v1877 = vadd.f32 %v1875, %v1204
    %v1878 = vadd.f32 %v1876, %v1205
    %v1879 = vld [vmem:[#allocation4 + $0x3b0] sm:$0xff]
    %v1880 = vld [vmem:[#allocation4 + $0x3b8] sm:$0xff]
    %v1881 = vld [vmem:[#allocation4 + $0x3c0] sm:$0xff]
    %v1882 = vld [vmem:[#allocation4 + $0x3c8] sm:$0xff]
    %v1883 = vld [vmem:[#allocation4 + $0x3d0] sm:$0xff]
    %v1884 = vld [vmem:[#allocation4 + $0x3d8] sm:$0xff]
    %v1885 = vld [vmem:[#allocation4 + $0x3e0] sm:$0xff]
    %v1886 = vld [vmem:[#allocation4 + $0x3e8] sm:$0xff]
    %v1887 = vld [vmem:[#allocation4 + $0x3f0] sm:$0xff]
    %v1888 = vld [vmem:[#allocation4 + $0x3f8] sm:$0xff]
    %v1889 = vld [vmem:[#allocation4 + $0x400] sm:$0xff]
    %v1890 = vld [vmem:[#allocation4 + $0x408] sm:$0xff]
    %v1891 = vld [vmem:[#allocation4 + $0x410] sm:$0xff]
    %v1892 = vld [vmem:[#allocation4 + $0x418] sm:$0xff]
    %v1893 = vld [vmem:[#allocation4 + $0x420] sm:$0xff]
    %v1894 = vld [vmem:[#allocation4 + $0x428] sm:$0xff]
    %v1895 = vld [vmem:[#allocation6 + $0x108] ss:$0 sm:$0xff]
    %v1896 = vld [vmem:[#allocation4 + $0x430] sm:$0xff]
    %v1897 = vld [vmem:[#allocation4 + $0x438] sm:$0xff]
    %v1898 = vld [vmem:[#allocation4 + $0x440] sm:$0xff]
    %v1899 = vld [vmem:[#allocation4 + $0x448] sm:$0xff]
    %v1901 = vsel %vm407, %v1877, 0
    %v1904 = vsel %vm407, %v1878, 0
    %1906 = vmatprep.subr.mxu0 0.0
    %1907 = vmatpush1.msra.mxu0 %v1879
    %1908 = vmatprep.subr.mxu0 0.0
    %1909 = vmatpush1.msra.mxu0 %v1880
    %1910 = vmatprep.subr.mxu0 0.0
    %1911 = vmatpush1.msra.mxu0 %v1881
    %1912 = vmatprep.subr.mxu0 0.0
    %1913 = vmatpush1.msra.mxu0 %v1882
    %1914 = vmatprep.subr.mxu0 0.0
    %1915 = vmatpush1.msra.mxu0 %v1883
    %1916 = vmatprep.subr.mxu0 0.0
    %1917 = vmatpush1.msra.mxu0 %v1884
    %1918 = vmatprep.subr.mxu0 0.0
    %1919 = vmatpush1.msra.mxu0 %v1885
    %1920 = vmatprep.subr.mxu0 0.0
    %1921 = vmatpush1.msra.mxu0 %v1886
    %1922 = vmatprep.subr.mxu0 0.0
    %1923 = vmatpush1.msra.mxu0 0.0
    %1924 = vmatprep.subr.mxu0 0.0
    %1925 = vmatpush1.msra.mxu0 0.0
    %1926 = vmatprep.subr.mxu0 0.0
    %1927 = vmatpush1.msra.mxu0 0.0
    %1928 = vmatprep.subr.mxu0 0.0
    %1929 = vmatpush1.msra.mxu0 0.0
    %1930 = vmatprep.subr.mxu0 0.0
    %1931 = vmatpush1.msra.mxu0 0.0
    %1932 = vmatprep.subr.mxu0 0.0
    %1933 = vmatpush1.msra.mxu0 0.0
    %1934 = vmatprep.subr.mxu0 0.0
    %1935 = vmatpush1.msra.mxu0 0.0
    %1936 = vmatprep.subr.mxu0 0.0
    %1937 = vmatpush1.msra.mxu0 0.0
    %1938 = vmatprep.subr.mxu0 0.0
    %1939 = vmatpush1.msra.mxu0 0.0
    %1940 = vmatprep.subr.mxu0 0.0
    %1941 = vmatpush1.msra.mxu0 0.0
    %1942 = vmatprep.subr.mxu0 0.0
    %1943 = vmatpush1.msra.mxu0 0.0
    %1944 = vmatprep.subr.mxu0 0.0
    %1945 = vmatpush1.msra.mxu0 0.0
    %1946 = vmatprep.subr.mxu0 0.0
    %1947 = vmatpush1.msra.mxu0 0.0
    %1948 = vmatprep.subr.mxu0 0.0
    %1949 = vmatpush1.msra.mxu0 0.0
    %1950 = vmatprep.subr.mxu0 0.0
    %1951 = vmatpush1.msra.mxu0 0.0
    %1952 = vmatprep.subr.mxu0 0.0
    %1953 = vmatpush1.msra.mxu0 0.0
    %1954 = vmatprep.subr.mxu0 0.0
    %1955 = vmatpush1.msra.mxu0 0.0
    %1956 = vmatprep.subr.mxu0 0.0
    %1957 = vmatpush1.msra.mxu0 0.0
    %1958 = vmatprep.subr.mxu0 0.0
    %1959 = vmatpush1.msra.mxu0 0.0
    %1960 = vmatprep.subr.mxu0 0.0
    %1961 = vmatpush1.msra.mxu0 0.0
    %1962 = vmatprep.subr.mxu0 0.0
    %1963 = vmatpush1.msra.mxu0 0.0
    %1964 = vmatprep.subr.mxu0 0.0
    %1965 = vmatpush1.msra.mxu0 0.0
    %1966 = vmatprep.subr.mxu0 0.0
    %1967 = vmatpush1.msra.mxu0 0.0
    %1968 = vmatprep.subr.mxu0 0.0
    %1969 = vmatpush1.msra.mxu0 0.0
    %1970 = vmatprep.mubr.f32.mxu0 0.0
    %1971 = vmatmul.mubr.f32.gmra.mrb[0].mxu0 %v1901
    %v1972 = vpop.f32.mrb[0].mxu0
    %v1973 = vadd.f32 0.0, %v1972
    %v1974 = vpop.f32.mrb[0].mxu0
    %1975 = vmatprep.mubr.f32.mxu0 0.0
    %1976 = vmatmul.mubr.f32.gmra.mrb[0].mxu0 %v1904
    %v1977 = vpop.f32.mrb[0].mxu0
    %v1978 = vadd.f32 0.0, %v1977
    %v1979 = vpop.f32.mrb[0].mxu0
    %1980 = vdwg.mxu0
    %1981 = vmatprep.subr.mxu0 0.0
    %1982 = vmatpush1.msra.mxu0 %v1887
    %1983 = vmatprep.subr.mxu0 0.0
    %1984 = vmatpush1.msra.mxu0 %v1888
    %1985 = vmatprep.subr.mxu0 0.0
    %1986 = vmatpush1.msra.mxu0 %v1889
    %1987 = vmatprep.subr.mxu0 0.0
    %1988 = vmatpush1.msra.mxu0 %v1890
    %1989 = vmatprep.subr.mxu0 0.0
    %1990 = vmatpush1.msra.mxu0 %v1891
    %1991 = vmatprep.subr.mxu0 0.0
    %1992 = vmatpush1.msra.mxu0 %v1892
    %1993 = vmatprep.subr.mxu0 0.0
    %1994 = vmatpush1.msra.mxu0 %v1893
    %1995 = vmatprep.subr.mxu0 0.0
    %1996 = vmatpush1.msra.mxu0 %v1894
    %1997 = vmatprep.subr.mxu0 0.0
    %1998 = vmatpush1.msra.mxu0 0.0
    %1999 = vmatprep.subr.mxu0 0.0
    %2000 = vmatpush1.msra.mxu0 0.0
    %2001 = vmatprep.subr.mxu0 0.0
    %2002 = vmatpush1.msra.mxu0 0.0
    %2003 = vmatprep.subr.mxu0 0.0
    %2004 = vmatpush1.msra.mxu0 0.0
    %2005 = vmatprep.subr.mxu0 0.0
    %2006 = vmatpush1.msra.mxu0 0.0
    %2007 = vmatprep.subr.mxu0 0.0
    %2008 = vmatpush1.msra.mxu0 0.0
    %2009 = vmatprep.subr.mxu0 0.0
    %2010 = vmatpush1.msra.mxu0 0.0
    %2011 = vmatprep.subr.mxu0 0.0
    %2012 = vmatpush1.msra.mxu0 0.0
    %2013 = vmatprep.subr.mxu0 0.0
    %2014 = vmatpush1.msra.mxu0 0.0
    %2015 = vmatprep.subr.mxu0 0.0
    %2016 = vmatpush1.msra.mxu0 0.0
    %2017 = vmatprep.subr.mxu0 0.0
    %2018 = vmatpush1.msra.mxu0 0.0
    %2019 = vmatprep.subr.mxu0 0.0
    %2020 = vmatpush1.msra.mxu0 0.0
    %2021 = vmatprep.subr.mxu0 0.0
    %2022 = vmatpush1.msra.mxu0 0.0
    %2023 = vmatprep.subr.mxu0 0.0
    %2024 = vmatpush1.msra.mxu0 0.0
    %2025 = vmatprep.subr.mxu0 0.0
    %2026 = vmatpush1.msra.mxu0 0.0
    %2027 = vmatprep.subr.mxu0 0.0
    %2028 = vmatpush1.msra.mxu0 0.0
    %2029 = vmatprep.subr.mxu0 0.0
    %2030 = vmatpush1.msra.mxu0 0.0
    %2031 = vmatprep.subr.mxu0 0.0
    %2032 = vmatpush1.msra.mxu0 0.0
    %2033 = vmatprep.subr.mxu0 0.0
    %2034 = vmatpush1.msra.mxu0 0.0
    %2035 = vmatprep.subr.mxu0 0.0
    %2036 = vmatpush1.msra.mxu0 0.0
    %2037 = vmatprep.subr.mxu0 0.0
    %2038 = vmatpush1.msra.mxu0 0.0
    %2039 = vmatprep.subr.mxu0 0.0
    %2040 = vmatpush1.msra.mxu0 0.0
    %2041 = vmatprep.subr.mxu0 0.0
    %2042 = vmatpush1.msra.mxu0 0.0
    %2043 = vmatprep.subr.mxu0 0.0
    %2044 = vmatpush1.msra.mxu0 0.0
    %2045 = vmatprep.mubr.f32.mxu0 0.0
    %2046 = vmatmul.mubr.f32.gmra.mrb[0].mxu0 %v1901
    %v2047 = vpop.f32.mrb[0].mxu0
    %v2048 = vadd.f32 0.0, %v2047
    %v2049 = vpop.f32.mrb[0].mxu0
    %2050 = vmatprep.mubr.f32.mxu0 0.0
    %2051 = vmatmul.mubr.f32.gmra.mrb[0].mxu0 %v1904
    %v2052 = vpop.f32.mrb[0].mxu0
    %v2053 = vadd.f32 0.0, %v2052
    %v2054 = vpop.f32.mrb[0].mxu0
    %2055 = vdwg.mxu0
    %v2057 = vsel %vm215, %v1896, 0
    %v2060 = vsel %vm215, %v1897, 0
    %v2063 = vsel %vm215, %v1898, 0
    %v2066 = vsel %vm215, %v1899, 0
    %2068 = vmatprep.subr.mxu0 0.0
    %2069 = vmatpush1.msra.mxu0 %v1973
    %2070 = vmatprep.subr.mxu0 0.0
    %2071 = vmatpush1.msra.mxu0 %v1978
    %2072 = vmatprep.subr.mxu0 0.0
    %2073 = vmatpush1.msra.mxu0 %v2048
    %2074 = vmatprep.subr.mxu0 0.0
    %2075 = vmatpush1.msra.mxu0 %v2053
    %2076 = vmatprep.subr.mxu0 0.0
    %2077 = vmatpush1.msra.mxu0 0.0
    %2078 = vmatprep.subr.mxu0 0.0
    %2079 = vmatpush1.msra.mxu0 0.0
    %2080 = vmatprep.subr.mxu0 0.0
    %2081 = vmatpush1.msra.mxu0 0.0
    %2082 = vmatprep.subr.mxu0 0.0
    %2083 = vmatpush1.msra.mxu0 0.0
    %2084 = vmatprep.subr.mxu0 0.0
    %2085 = vmatpush1.msra.mxu0 0.0
    %2086 = vmatprep.subr.mxu0 0.0
    %2087 = vmatpush1.msra.mxu0 0.0
    %2088 = vmatprep.subr.mxu0 0.0
    %2089 = vmatpush1.msra.mxu0 0.0
    %2090 = vmatprep.subr.mxu0 0.0
    %2091 = vmatpush1.msra.mxu0 0.0
    %2092 = vmatprep.subr.mxu0 0.0
    %2093 = vmatpush1.msra.mxu0 0.0
    %2094 = vmatprep.subr.mxu0 0.0
    %2095 = vmatpush1.msra.mxu0 0.0
    %2096 = vmatprep.subr.mxu0 0.0
    %2097 = vmatpush1.msra.mxu0 0.0
    %2098 = vmatprep.subr.mxu0 0.0
    %2099 = vmatpush1.msra.mxu0 0.0
    %2100 = vmatprep.subr.mxu0 0.0
    %2101 = vmatpush1.msra.mxu0 0.0
    %2102 = vmatprep.subr.mxu0 0.0
    %2103 = vmatpush1.msra.mxu0 0.0
    %2104 = vmatprep.subr.mxu0 0.0
    %2105 = vmatpush1.msra.mxu0 0.0
    %2106 = vmatprep.subr.mxu0 0.0
    %2107 = vmatpush1.msra.mxu0 0.0
    %2108 = vmatprep.subr.mxu0 0.0
    %2109 = vmatpush1.msra.mxu0 0.0
    %2110 = vmatprep.subr.mxu0 0.0
    %2111 = vmatpush1.msra.mxu0 0.0
    %2112 = vmatprep.subr.mxu0 0.0
    %2113 = vmatpush1.msra.mxu0 0.0
    %2114 = vmatprep.subr.mxu0 0.0
    %2115 = vmatpush1.msra.mxu0 0.0
    %2116 = vmatprep.subr.mxu0 0.0
    %2117 = vmatpush1.msra.mxu0 0.0
    %2118 = vmatprep.subr.mxu0 0.0
    %2119 = vmatpush1.msra.mxu0 0.0
    %2120 = vmatprep.subr.mxu0 0.0
    %2121 = vmatpush1.msra.mxu0 0.0
    %2122 = vmatprep.subr.mxu0 0.0
    %2123 = vmatpush1.msra.mxu0 0.0
    %2124 = vmatprep.subr.mxu0 0.0
    %2125 = vmatpush1.msra.mxu0 0.0
    %2126 = vmatprep.subr.mxu0 0.0
    %2127 = vmatpush1.msra.mxu0 0.0
    %2128 = vmatprep.subr.mxu0 0.0
    %2129 = vmatpush1.msra.mxu0 0.0
    %2130 = vmatprep.subr.mxu0 0.0
    %2131 = vmatpush1.msra.mxu0 0.0
    %2132 = vmatprep.mubr.f32.mxu0 0.0
    %2133 = vmatmul.mubr.f32.gmra.mrb[0].mxu0 %v2057
    %v2134 = vpop.f32.mrb[0].mxu0
    %v2135 = vadd.f32 %v1895, %v2134
    %v2136 = vpop.f32.mrb[0].mxu0
    %2137 = vmatprep.mubr.f32.mxu0 0.0
    %2138 = vmatmul.mubr.f32.gmra.mrb[0].mxu0 %v2060
    %v2139 = vpop.f32.mrb[0].mxu0
    %v2140 = vadd.f32 %v1895, %v2139
    %v2141 = vpop.f32.mrb[0].mxu0
    %2142 = vmatprep.mubr.f32.mxu0 0.0
    %2143 = vmatmul.mubr.f32.gmra.mrb[0].mxu0 %v2063
    %v2144 = vpop.f32.mrb[0].mxu0
    %v2145 = vadd.f32 %v1895, %v2144
    %v2146 = vpop.f32.mrb[0].mxu0
    %2147 = vmatprep.mubr.f32.mxu0 0.0
    %2148 = vmatmul.mubr.f32.gmra.mrb[0].mxu0 %v2066
    %v2149 = vpop.f32.mrb[0].mxu0
    %v2150 = vadd.f32 %v1895, %v2149
    %v2151 = vpop.f32.mrb[0].mxu0
    %2152 = vdwg.mxu0
    %v2153 = vmax.f32 %v2135, 0.0
    %v2154 = vmax.f32 %v2140, 0.0
    %v2155 = vmax.f32 %v2145, 0.0
    %v2156 = vmax.f32 %v2150, 0.0
    %v2157 = vld [vmem:[#allocation4 + $0x450] sm:$0xff]
    %v2158 = vld [vmem:[#allocation4 + $0x458] sm:$0xff]
    %v2159 = vld [vmem:[#allocation4 + $0x460] sm:$0xff]
    %v2160 = vld [vmem:[#allocation4 + $0x468] sm:$0xff]
    %v2161 = vld [vmem:[#allocation4 + $0x470] sm:$0xff]
    %v2162 = vld [vmem:[#allocation4 + $0x478] sm:$0xff]
    %v2163 = vld [vmem:[#allocation4 + $0x480] sm:$0xff]
    %v2164 = vld [vmem:[#allocation4 + $0x488] sm:$0xff]
    %v2165 = vld [vmem:[#allocation4 + $0x490] sm:$0xff]
    %v2166 = vld [vmem:[#allocation4 + $0x498] sm:$0xff]
    %v2167 = vld [vmem:[#allocation4 + $0x4a0] sm:$0xff]
    %v2168 = vld [vmem:[#allocation4 + $0x4a8] sm:$0xff]
    %v2169 = vld [vmem:[#allocation4 + $0x4b0] sm:$0xff]
    %v2170 = vld [vmem:[#allocation4 + $0x4b8] sm:$0xff]
    %v2171 = vld [vmem:[#allocation4 + $0x4c0] sm:$0xff]
    %v2172 = vld [vmem:[#allocation4 + $0x4c8] sm:$0xff]
    %v2173 = vld [vmem:[#allocation4 + $0x4d0] sm:$0xff]
    %v2174 = vld [vmem:[#allocation4 + $0x4d8] sm:$0xff]
    %v2175 = vld [vmem:[#allocation4 + $0x4e0] sm:$0xff]
    %v2176 = vld [vmem:[#allocation4 + $0x4e8] sm:$0xff]
    %v2177 = vld [vmem:[#allocation4 + $0x4f0] sm:$0xff]
    %v2178 = vld [vmem:[#allocation4 + $0x4f8] sm:$0xff]
    %v2179 = vld [vmem:[#allocation4 + $0x500] sm:$0xff]
    %v2180 = vld [vmem:[#allocation4 + $0x508] sm:$0xff]
    %v2181 = vld [vmem:[#allocation4 + $0x510] sm:$0xff]
    %v2182 = vld [vmem:[#allocation4 + $0x518] sm:$0xff]
    %v2183 = vld [vmem:[#allocation4 + $0x520] sm:$0xff]
    %v2184 = vld [vmem:[#allocation4 + $0x528] sm:$0xff]
    %v2185 = vld [vmem:[#allocation4 + $0x530] sm:$0xff]
    %v2186 = vld [vmem:[#allocation4 + $0x538] sm:$0xff]
    %v2187 = vld [vmem:[#allocation4 + $0x540] sm:$0xff]
    %v2188 = vld [vmem:[#allocation4 + $0x548] sm:$0xff]
    %v2189 = vld [vmem:[#allocation4 + $0x550] sm:$0xff]
    %v2190 = vld [vmem:[#allocation4 + $0x558] sm:$0xff]
    %v2191 = vld [vmem:[#allocation4 + $0x560] sm:$0xff]
    %v2192 = vld [vmem:[#allocation4 + $0x568] sm:$0xff]
    %v2193 = vld [vmem:[#allocation4 + $0x570] sm:$0xff]
    %v2194 = vld [vmem:[#allocation4 + $0x578] sm:$0xff]
    %v2195 = vld [vmem:[#allocation4 + $0x580] sm:$0xff]
    %v2196 = vld [vmem:[#allocation4 + $0x588] sm:$0xff]
    %v2197 = vld [vmem:[#allocation4 + $0x590] sm:$0xff]
    %v2198 = vld [vmem:[#allocation4 + $0x598] sm:$0xff]
    %v2199 = vld [vmem:[#allocation4 + $0x5a0] sm:$0xff]
    %v2200 = vld [vmem:[#allocation4 + $0x5a8] sm:$0xff]
    %v2201 = vld [vmem:[#allocation4 + $0x5b0] sm:$0xff]
    %v2202 = vld [vmem:[#allocation4 + $0x5b8] sm:$0xff]
    %v2203 = vld [vmem:[#allocation4 + $0x5c0] sm:$0xff]
    %v2204 = vld [vmem:[#allocation4 + $0x5c8] sm:$0xff]
    %v2205 = vld [vmem:[#allocation6 + $0x138] sm:$0xff]
    %v2206 = vld [vmem:[#allocation6 + $0x140] sm:$0xff]
    %v2207 = vld [vmem:[#allocation6 + $0x148] sm:$0xff]
    %v2208 = vld [vmem:[#allocation6 + $0x150] sm:$0xff]
    %v2209 = vld [vmem:[#allocation6 + $0x158] sm:$0xff]
    %v2210 = vld [vmem:[#allocation6 + $0x160] sm:$0xff]
    %v2211 = vld [vmem:[#allocation6 + $0x168] sm:$0xff]
    %v2212 = vld [vmem:[#allocation6 + $0x170] sm:$0xff]
    %v2213 = vld [vmem:[#allocation6 + $0x178] sm:$0xff]
    %v2214 = vld [vmem:[#allocation6 + $0x180] sm:$0xff]
    %v2215 = vld [vmem:[#allocation6 + $0x188] sm:$0xff]
    %v2216 = vld [vmem:[#allocation6 + $0x190] sm:$0xff]
    %v2217 = vld [vmem:[#allocation6 + $0x120] ss:$0 sm:$0xff]
    %v2218 = vrot.slane %v2153, 7
    %v2219 = vrot.slane %v2154, 7
    %v2220 = vrot.slane %v2155, 7
    %v2221 = vrot.slane %v2156, 7
    %v2222 = vsel %vm1247, %v2220, %v2221
    %v2223 = vsel %vm1247, %v2219, %v2220
    %v2224 = vsel %vm1247, %v2218, %v2219
    %v2225 = vsel %vm1247, %v2221, %v2218
    %v2226 = vrot.slane %v2153, 1
    %v2227 = vrot.slane %v2154, 1
    %v2228 = vrot.slane %v2155, 1
    %v2229 = vrot.slane %v2156, 1
    %v2230 = vsel %vm1252, %v2228, %v2229
    %v2231 = vsel %vm1252, %v2227, %v2228
    %v2232 = vsel %vm1252, %v2226, %v2227
    %v2233 = vsel %vm1252, %v2229, %v2226
    %v2234 = vmul.f32 %v2225, %v2205
    %v2235 = vmul.f32 %v2153, %v2206
    %v2236 = vmul.f32 %v2232, %v2207
    %v2237 = vmul.f32 %v2224, %v2208
    %v2238 = vmul.f32 %v2154, %v2209
    %v2239 = vmul.f32 %v2231, %v2210
    %v2240 = vmul.f32 %v2223, %v2211
    %v2241 = vmul.f32 %v2155, %v2212
    %v2242 = vmul.f32 %v2230, %v2213
    %v2243 = vmul.f32 %v2222, %v2214
    %v2244 = vmul.f32 %v2156, %v2215
    %v2245 = vmul.f32 %v2233, %v2216
    %2246 = vmatprep.subr.mxu0 0.0
    %2247 = vmatpush1.msra.mxu0 %v2157
    %2248 = vmatprep.subr.mxu0 0.0
    %2249 = vmatpush1.msra.mxu0 %v2158
    %2250 = vmatprep.subr.mxu0 0.0
    %2251 = vmatpush1.msra.mxu0 %v2159
    %2252 = vmatprep.subr.mxu0 0.0
    %2253 = vmatpush1.msra.mxu0 %v2160
    %2254 = vmatprep.subr.mxu0 0.0
    %2255 = vmatpush1.msra.mxu0 %v2161
    %2256 = vmatprep.subr.mxu0 0.0
    %2257 = vmatpush1.msra.mxu0 %v2162
    %2258 = vmatprep.subr.mxu0 0.0
    %2259 = vmatpush1.msra.mxu0 %v2163
    %2260 = vmatprep.subr.mxu0 0.0
    %2261 = vmatpush1.msra.mxu0 %v2164
    %2262 = vmatprep.subr.mxu0 0.0
    %2263 = vmatpush1.msra.mxu0 %v2165
    %2264 = vmatprep.subr.mxu0 0.0
    %2265 = vmatpush1.msra.mxu0 %v2166
    %2266 = vmatprep.subr.mxu0 0.0
    %2267 = vmatpush1.msra.mxu0 %v2167
    %2268 = vmatprep.subr.mxu0 0.0
    %2269 = vmatpush1.msra.mxu0 %v2168
    %2270 = vmatprep.subr.mxu0 0.0
    %2271 = vmatpush1.msra.mxu0 %v2169
    %2272 = vmatprep.subr.mxu0 0.0
    %2273 = vmatpush1.msra.mxu0 %v2170
    %2274 = vmatprep.subr.mxu0 0.0
    %2275 = vmatpush1.msra.mxu0 %v2171
    %2276 = vmatprep.subr.mxu0 0.0
    %2277 = vmatpush1.msra.mxu0 %v2172
    %2278 = vmatprep.subr.mxu0 0.0
    %2279 = vmatpush1.msra.mxu0 %v2173
    %2280 = vmatprep.subr.mxu0 0.0
    %2281 = vmatpush1.msra.mxu0 %v2174
    %2282 = vmatprep.subr.mxu0 0.0
    %2283 = vmatpush1.msra.mxu0 %v2175
    %2284 = vmatprep.subr.mxu0 0.0
    %2285 = vmatpush1.msra.mxu0 %v2176
    %2286 = vmatprep.subr.mxu0 0.0
    %2287 = vmatpush1.msra.mxu0 %v2177
    %2288 = vmatprep.subr.mxu0 0.0
    %2289 = vmatpush1.msra.mxu0 %v2178
    %2290 = vmatprep.subr.mxu0 0.0
    %2291 = vmatpush1.msra.mxu0 %v2179
    %2292 = vmatprep.subr.mxu0 0.0
    %2293 = vmatpush1.msra.mxu0 %v2180
    %2294 = vmatprep.subr.mxu0 0.0
    %2295 = vmatpush1.msra.mxu0 %v2181
    %2296 = vmatprep.subr.mxu0 0.0
    %2297 = vmatpush1.msra.mxu0 %v2182
    %2298 = vmatprep.subr.mxu0 0.0
    %2299 = vmatpush1.msra.mxu0 %v2183
    %2300 = vmatprep.subr.mxu0 0.0
    %2301 = vmatpush1.msra.mxu0 %v2184
    %2302 = vmatprep.subr.mxu0 0.0
    %2303 = vmatpush1.msra.mxu0 %v2185
    %2304 = vmatprep.subr.mxu0 0.0
    %2305 = vmatpush1.msra.mxu0 %v2186
    %2306 = vmatprep.subr.mxu0 0.0
    %2307 = vmatpush1.msra.mxu0 %v2187
    %2308 = vmatprep.subr.mxu0 0.0
    %2309 = vmatpush1.msra.mxu0 %v2188
    %2310 = vmatprep.mubr.f32.mxu0 %v2235
    %2311 = vmatmul.mubr.f32.gmra.mrb[0].mxu0 %v2234
    %v2312 = vpop.f32.mrb[0].mxu0
    %v2313 = vadd.f32 %v2217, %v2312
    %v2314 = vpop.f32.mrb[0].mxu0
    %2315 = vmatprep.mubr.f32.mxu0 %v2238
    %2316 = vmatmul.mubr.f32.gmra.mrb[0].mxu0 %v2237
    %v2317 = vpop.f32.mrb[0].mxu0
    %v2318 = vadd.f32 %v2217, %v2317
    %v2319 = vpop.f32.mrb[0].mxu0
    %2320 = vmatprep.mubr.f32.mxu0 %v2241
    %2321 = vmatmul.mubr.f32.gmra.mrb[0].mxu0 %v2240
    %v2322 = vpop.f32.mrb[0].mxu0
    %v2323 = vadd.f32 %v2217, %v2322
    %v2324 = vpop.f32.mrb[0].mxu0
    %2325 = vmatprep.mubr.f32.mxu0 %v2244
    %2326 = vmatmul.mubr.f32.gmra.mrb[0].mxu0 %v2243
    %v2327 = vpop.f32.mrb[0].mxu0
    %v2328 = vadd.f32 %v2217, %v2327
    %v2329 = vpop.f32.mrb[0].mxu0
    %2330 = vdwg.mxu0
    %2331 = vmatprep.subr.mxu0 0.0
    %2332 = vmatpush1.msra.mxu0 %v2189
    %2333 = vmatprep.subr.mxu0 0.0
    %2334 = vmatpush1.msra.mxu0 %v2190
    %2335 = vmatprep.subr.mxu0 0.0
    %2336 = vmatpush1.msra.mxu0 %v2191
    %2337 = vmatprep.subr.mxu0 0.0
    %2338 = vmatpush1.msra.mxu0 %v2192
    %2339 = vmatprep.subr.mxu0 0.0
    %2340 = vmatpush1.msra.mxu0 %v2193
    %2341 = vmatprep.subr.mxu0 0.0
    %2342 = vmatpush1.msra.mxu0 %v2194
    %2343 = vmatprep.subr.mxu0 0.0
    %2344 = vmatpush1.msra.mxu0 %v2195
    %2345 = vmatprep.subr.mxu0 0.0
    %2346 = vmatpush1.msra.mxu0 %v2196
    %2347 = vmatprep.subr.mxu0 0.0
    %2348 = vmatpush1.msra.mxu0 %v2197
    %2349 = vmatprep.subr.mxu0 0.0
    %2350 = vmatpush1.msra.mxu0 %v2198
    %2351 = vmatprep.subr.mxu0 0.0
    %2352 = vmatpush1.msra.mxu0 %v2199
    %2353 = vmatprep.subr.mxu0 0.0
    %2354 = vmatpush1.msra.mxu0 %v2200
    %2355 = vmatprep.subr.mxu0 0.0
    %2356 = vmatpush1.msra.mxu0 %v2201
    %2357 = vmatprep.subr.mxu0 0.0
    %2358 = vmatpush1.msra.mxu0 %v2202
    %2359 = vmatprep.subr.mxu0 0.0
    %2360 = vmatpush1.msra.mxu0 %v2203
    %2361 = vmatprep.subr.mxu0 0.0
    %2362 = vmatpush1.msra.mxu0 %v2204
    %2363 = vmatprep.subr.mxu0 0.0
    %2364 = vmatpush1.msra.mxu0 0.0
    %2365 = vmatprep.subr.mxu0 0.0
    %2366 = vmatpush1.msra.mxu0 0.0
    %2367 = vmatprep.subr.mxu0 0.0
    %2368 = vmatpush1.msra.mxu0 0.0
    %2369 = vmatprep.subr.mxu0 0.0
    %2370 = vmatpush1.msra.mxu0 0.0
    %2371 = vmatprep.subr.mxu0 0.0
    %2372 = vmatpush1.msra.mxu0 0.0
    %2373 = vmatprep.subr.mxu0 0.0
    %2374 = vmatpush1.msra.mxu0 0.0
    %2375 = vmatprep.subr.mxu0 0.0
    %2376 = vmatpush1.msra.mxu0 0.0
    %2377 = vmatprep.subr.mxu0 0.0
    %2378 = vmatpush1.msra.mxu0 0.0
    %2379 = vmatprep.subr.mxu0 0.0
    %2380 = vmatpush1.msra.mxu0 0.0
    %2381 = vmatprep.subr.mxu0 0.0
    %2382 = vmatpush1.msra.mxu0 0.0
    %2383 = vmatprep.subr.mxu0 0.0
    %2384 = vmatpush1.msra.mxu0 0.0
    %2385 = vmatprep.subr.mxu0 0.0
    %2386 = vmatpush1.msra.mxu0 0.0
    %2387 = vmatprep.subr.mxu0 0.0
    %2388 = vmatpush1.msra.mxu0 0.0
    %2389 = vmatprep.subr.mxu0 0.0
    %2390 = vmatpush1.msra.mxu0 0.0
    %2391 = vmatprep.subr.mxu0 0.0
    %2392 = vmatpush1.msra.mxu0 0.0
    %2393 = vmatprep.subr.mxu0 0.0
    %2394 = vmatpush1.msra.mxu0 0.0
    %2395 = vmatprep.mubr.f32.mxu0 0.0
    %2396 = vmatmul.mubr.f32.gmra.mrb[0].mxu0 %v2236
    %v2397 = vpop.f32.mrb[0].mxu0
    %v2398 = vadd.f32 %v2313, %v2397
    %v2399 = vpop.f32.mrb[0].mxu0
    %2400 = vmatprep.mubr.f32.mxu0 0.0
    %2401 = vmatmul.mubr.f32.gmra.mrb[0].mxu0 %v2239
    %v2402 = vpop.f32.mrb[0].mxu0
    %v2403 = vadd.f32 %v2318, %v2402
    %v2404 = vpop.f32.mrb[0].mxu0
    %2405 = vmatprep.mubr.f32.mxu0 0.0
    %2406 = vmatmul.mubr.f32.gmra.mrb[0].mxu0 %v2242
    %v2407 = vpop.f32.mrb[0].mxu0
    %v2408 = vadd.f32 %v2323, %v2407
    %v2409 = vpop.f32.mrb[0].mxu0
    %2410 = vmatprep.mubr.f32.mxu0 0.0
    %2411 = vmatmul.mubr.f32.gmra.mrb[0].mxu0 %v2245
    %v2412 = vpop.f32.mrb[0].mxu0
    %v2413 = vadd.f32 %v2328, %v2412
    %v2414 = vpop.f32.mrb[0].mxu0
    %2415 = vdwg.mxu0
    %v2416 = vsub.f32 0.0, %v2398
    %v2417 = vsub.f32 0.0, %v2403
    %v2418 = vsub.f32 0.0, %v2408
    %v2419 = vsub.f32 0.0, %v2413
    %v2420 = vmul.f32 %v2416, 1.442695
    %v2421 = vpow.pop %v2420
    %v2422 = vmul.f32 %v2417, 1.442695
    %v2423 = vpow.pop %v2422
    %v2424 = vmul.f32 %v2418, 1.442695
    %v2425 = vpow.pop %v2424
    %v2426 = vmul.f32 %v2419, 1.442695
    %v2427 = vpow.pop %v2426
    %v2428 = vadd.f32 %v2421, 1.0
    %v2429 = vadd.f32 %v2423, 1.0
    %v2430 = vadd.f32 %v2425, 1.0
    %v2431 = vadd.f32 %v2427, 1.0
    %v2432 = vrcp.pop %v2428
    %v2433 = vrcp.pop %v2429
    %v2434 = vrcp.pop %v2430
    %v2435 = vrcp.pop %v2431
    %v2436 = vmax.f32 %v2432, 0.0
    %v2437 = vmax.f32 %v2433, 0.0
    %v2438 = vmax.f32 %v2434, 0.0
    %v2439 = vmax.f32 %v2435, 0.0
    %v2440 = vmin.f32 %v2436, 1.0
    %v2441 = vmin.f32 %v2437, 1.0
    %v2442 = vmin.f32 %v2438, 1.0
    %v2443 = vmin.f32 %v2439, 1.0
    %2444 = vst [vmem:[%s3] sm:$0xff] %v2440
    %2445 = vst [vmem:[%s3 + $0x8] sm:$0xff] %v2441
    %2446 = vst [vmem:[%s3 + $0x10] sm:$0xff] %v2442
    %2447 = vst [vmem:[%s3 + $0x18] sm:$0xff] %v2443
    // Predicated region
    $region26: #{forward.1} parent=1 // pred_check
      _
    $region27: #{forward.1} parent=1 // pred_check_branch
      %2449 = sbr.rel (0) target = $region29
    $region28: #{forward.1} parent=1 // pred_region
      _
    $region29: #{forward.1} parent=1 // pred_fallthru
      _
    // Predicated region
    $region30: #{forward.1} parent=1 // pred_check
      _
    $region31: #{forward.1} parent=1 // pred_check_branch
      %2451 = sbr.rel (0) target = $region33
    $region32: #{forward.1} parent=1 // pred_region
      _
    $region33: #{forward.1} parent=1 // pred_fallthru
      _
    %2452 = vsyncpa [#allocation3], 1
    %2453 = vsyncpa [#allocation5], 1

</llo_original>
